<compile_context>
chip_gen: v6e
topology: v6e:2x2x1
jax: 0.10.0
libtpu: 0.0.40
codegen_flags: <defaults>
</compile_context>

<pallas_src>
import jax
import jax.numpy as jnp
from jax.experimental import pallas as pl
from jax.experimental.pallas import tpu as pltpu

IMG_SIZE = 16                      # parameters['img_size']
D_IN = IMG_SIZE * IMG_SIZE         # 256
D_HID = 1024
D_OUT = 10
D_OUT_PAD = 128                    # lane-dense padded output width
TB_MAX = 2048                      # max batch tile rows


def _round_up(v, m):
    return ((v + m - 1) // m) * m


def bnn_kernel(x_ref, w1_ref, b1_ref, w2_ref, b2_ref, o_ref):
    # x_ref: (TB, D_IN) f32, w1_ref: (D_IN, D_HID) bf16, b1_ref: (1, D_HID) f32
    # w2_ref: (D_HID, D_OUT_PAD) bf16, b2_ref: (1, D_OUT_PAD) f32
    # o_ref: (TB, D_OUT_PAD) f32
    x = x_ref[...].astype(jnp.bfloat16)            # in-kernel cast (no extra HBM pass)
    h = jnp.dot(x, w1_ref[...], preferred_element_type=jnp.float32) + b1_ref[...]
    h = jnp.maximum(h, 0.2 * h)                    # LeakyReLU(0.2), f32
    out = jnp.dot(h.astype(jnp.bfloat16), w2_ref[...],
                  preferred_element_type=jnp.float32) + b2_ref[...]
    o_ref[...] = out.astype(o_ref.dtype)


def bnn_forward(x, w1, b1, w2p, b2p):
    """x: (B, 1, IMG, IMG) or (B, D_IN). Returns (B, D_OUT) float32."""
    B = x.shape[0]
    x = x.reshape(B, -1).astype(jnp.float32)       # flatten(1); stays f32 (cast in-kernel)

    # Batch tile: multiple of 8 sublanes.
    #  * Non-tiny batches: tb ~= ceil(B/2) so grid >= 2 steps -> both v7x TensorCores work.
    #  * Capped at TB_MAX=2048: per-step VMEM (double-buffered x/out tiles, resident
    #    weights, (TB,1024) f32 hidden intermediate + bf16 copies) stays ~20 MiB.
    if B > 16:
        tb = min(TB_MAX, _round_up(pl.cdiv(B, 2), 8))
    else:
        tb = _round_up(max(B, 1), 8)
    grid = (pl.cdiv(B, tb),)                       # no pad: partial last block is masked

    flops = 2 * B * (D_IN * D_HID + D_HID * D_OUT_PAD)
    bytes_accessed = (x.size * 4 + w1.size * 2 + w2p.size * 2 +
                      b1.size * 4 + b2p.size * 4 + B * D_OUT_PAD * 4)

    out = pl.pallas_call(
        bnn_kernel,
        out_shape=jax.ShapeDtypeStruct((B, D_OUT_PAD), jnp.float32),
        grid_spec=pltpu.PrefetchScalarGridSpec(
            num_scalar_prefetch=0,
            grid=grid,
            in_specs=[
                pl.BlockSpec((tb, D_IN), lambda i: (i, 0)),        # batch-tiled input
                pl.BlockSpec((D_IN, D_HID), lambda i: (0, 0)),     # VMEM-resident weights
                pl.BlockSpec((1, D_HID), lambda i: (0, 0)),
                pl.BlockSpec((D_HID, D_OUT_PAD), lambda i: (0, 0)),
                pl.BlockSpec((1, D_OUT_PAD), lambda i: (0, 0)),
            ],
            out_specs=pl.BlockSpec((tb, D_OUT_PAD), lambda i: (i, 0)),
        ),
        compiler_params=pltpu.CompilerParams(
            dimension_semantics=("parallel",),
            # v5e's default scoped VMEM (16 MiB) is too small at TB=2048; 40 MiB is
            # still well under v7x's 64 MiB physical VMEM.
            vmem_limit_bytes=40 * 1024 * 1024,
        ),
        cost_estimate=pl.CostEstimate(
            flops=flops, transcendentals=0, bytes_accessed=bytes_accessed),
    )(x, w1, b1, w2p, b2p)

    return out[:, :D_OUT]


def init_params(key):
    # Deterministic init mimicking nn.Linear default: U(-1/sqrt(fan_in), 1/sqrt(fan_in)),
    # stored pre-transposed as (in_features, out_features); weights cast to bf16 and the
    # second layer zero-padded to 128 output lanes.
    k1, k2, k3, k4 = jax.random.split(key, 4)
    bound1 = 1.0 / (D_IN ** 0.5)
    bound2 = 1.0 / (D_HID ** 0.5)
    w1 = jax.random.uniform(k1, (D_IN, D_HID), jnp.float32, -bound1, bound1)
    b1 = jax.random.uniform(k2, (1, D_HID), jnp.float32, -bound1, bound1)
    w2 = jax.random.uniform(k3, (D_HID, D_OUT), jnp.float32, -bound2, bound2)
    b2 = jax.random.uniform(k4, (1, D_OUT), jnp.float32, -bound2, bound2)

    w1 = w1.astype(jnp.bfloat16)
    w2p = jnp.zeros((D_HID, D_OUT_PAD), jnp.bfloat16).at[:, :D_OUT].set(
        w2.astype(jnp.bfloat16))
    b2p = jnp.zeros((1, D_OUT_PAD), jnp.float32).at[:, :D_OUT].set(b2)
    return w1, b1, w2p, b2p


def reference_forward(x, w1, b1, w2p, b2p):
    # Mirrors the kernel's numeric path (bf16 matmuls, f32 accumulate/activation).
    B = x.shape[0]
    xf = x.reshape(B, -1).astype(jnp.bfloat16)
    h = jnp.dot(xf, w1, preferred_element_type=jnp.float32) + b1
    h = jnp.maximum(h, 0.2 * h)
    out = jnp.dot(h.astype(jnp.bfloat16), w2p,
                  preferred_element_type=jnp.float32) + b2p
    return out[:, :D_OUT]


if __name__ == "__main__":
    key = jax.random.PRNGKey(0)
    kx, kp = jax.random.split(key)
    B = 2
    # Equivalent to PyTorch input (B, 1, 16, 16); flatten(1) handled in the wrapper.
    x_img = jax.random.normal(kx, (B, 1, IMG_SIZE, IMG_SIZE), jnp.float32)

    w1, b1, w2p, b2p = init_params(kp)

    out = bnn_forward(x_img, w1, b1, w2p, b2p)
    out = jax.block_until_ready(out)

    ref = reference_forward(x_img, w1, b1, w2p, b2p)
    assert out.shape == (B, D_OUT)
    assert jnp.allclose(out, ref, atol=2e-3, rtol=2e-3), "mismatch vs reference"

    print("KERNEL_OK")
</pallas_src>

<mosaic_0001>
module attributes {stable_mosaic.version = 11 : i64} {
  func.func @bnn_kernel(%arg0: i32, %arg1: memref<8x256xf32, #tpu.memory_space<vmem>>, %arg2: memref<256x1024xbf16, #tpu.memory_space<vmem>>, %arg3: memref<1x1024xf32, #tpu.memory_space<vmem>>, %arg4: memref<1024x128xbf16, #tpu.memory_space<vmem>>, %arg5: memref<1x128xf32, #tpu.memory_space<vmem>>, %arg6: memref<8x128xf32, #tpu.memory_space<vmem>>) attributes {dimension_semantics = [#tpu.dimension_semantics<parallel>], iteration_bounds = array<i64: 1>, scalar_prefetch = 0 : i64, scratch_operands = 0 : i64, tpu.core_type = #tpu.core_type<tc>, window_params = [{transform_indices = @transform_0, window_bounds = array<i64: 8, 256>}, {pipeline_mode = #tpu.pipeline_mode<synchronous>, transform_indices = @transform_1, window_bounds = array<i64: 256, 1024>}, {pipeline_mode = #tpu.pipeline_mode<synchronous>, transform_indices = @transform_2, window_bounds = array<i64: 1, 1024>}, {pipeline_mode = #tpu.pipeline_mode<synchronous>, transform_indices = @transform_3, window_bounds = array<i64: 1024, 128>}, {pipeline_mode = #tpu.pipeline_mode<synchronous>, transform_indices = @transform_4, window_bounds = array<i64: 1, 128>}, {transform_indices = @transform_5, window_bounds = array<i64: 8, 128>}]} {
    %c0 = arith.constant 0 : index
    %c0_0 = arith.constant 0 : index
    %0 = vector.load %arg1[%c0, %c0_0] : memref<8x256xf32, #tpu.memory_space<vmem>>, vector<8x256xf32>
    %1 = arith.truncf %0 : vector<8x256xf32> to vector<8x256xbf16>
    %c0_1 = arith.constant 0 : index
    %c0_2 = arith.constant 0 : index
    %2 = vector.load %arg2[%c0_1, %c0_2] : memref<256x1024xbf16, #tpu.memory_space<vmem>>, vector<256x1024xbf16>
    %cst = arith.constant dense<0.000000e+00> : vector<8x1024xf32>
    %3 = tpu.matmul %1, %2, %cst {dimension_numbers = #tpu.dot_dimension_numbers<[1], [0], [0], [1], [0, 0, 1, 1], [], []>} : vector<8x256xbf16>, vector<256x1024xbf16>, vector<8x1024xf32> -> vector<8x1024xf32>
    %c0_3 = arith.constant 0 : index
    %c0_4 = arith.constant 0 : index
    %4 = vector.load %arg3[%c0_3, %c0_4] : memref<1x1024xf32, #tpu.memory_space<vmem>>, vector<1x1024xf32>
    %5 = vector.broadcast %4 : vector<1x1024xf32> to vector<8x1024xf32>
    %6 = arith.addf %3, %5 : vector<8x1024xf32>
    %cst_5 = arith.constant 2.000000e-01 : f32
    %7 = vector.broadcast %cst_5 : f32 to vector<8x1024xf32>
    %8 = arith.mulf %7, %6 : vector<8x1024xf32>
    %9 = arith.maximumf %6, %8 : vector<8x1024xf32>
    %10 = arith.truncf %9 : vector<8x1024xf32> to vector<8x1024xbf16>
    %c0_6 = arith.constant 0 : index
    %c0_7 = arith.constant 0 : index
    %11 = vector.load %arg4[%c0_6, %c0_7] : memref<1024x128xbf16, #tpu.memory_space<vmem>>, vector<1024x128xbf16>
    %cst_8 = arith.constant dense<0.000000e+00> : vector<8x128xf32>
    %12 = tpu.matmul %10, %11, %cst_8 {dimension_numbers = #tpu.dot_dimension_numbers<[1], [0], [0], [1], [0, 0, 1, 1], [], []>} : vector<8x1024xbf16>, vector<1024x128xbf16>, vector<8x128xf32> -> vector<8x128xf32>
    %c0_9 = arith.constant 0 : index
    %c0_10 = arith.constant 0 : index
    %13 = vector.load %arg5[%c0_9, %c0_10] : memref<1x128xf32, #tpu.memory_space<vmem>>, vector<1x128xf32>
    %14 = vector.broadcast %13 : vector<1x128xf32> to vector<8x128xf32>
    %15 = arith.addf %12, %14 : vector<8x128xf32>
    %c0_11 = arith.constant 0 : index
    %c0_12 = arith.constant 0 : index
    %16 = vector.load %arg6[%c0_11, %c0_12] : memref<8x128xf32, #tpu.memory_space<vmem>>, vector<8x128xf32>
    tpu.vector_store %arg6[%c0_11, %c0_12], %15 {strides = array<i32>} : memref<8x128xf32, #tpu.memory_space<vmem>>, vector<8x128xf32>,
    return
  }
  func.func @transform_0(%arg0: i32) -> (i32, i32) {
    %c0_i32 = arith.constant 0 : i32
    %c0_i32_0 = arith.constant 0 : i32
    return %arg0, %c0_i32 : i32, i32
  }
  func.func @transform_1(%arg0: i32) -> (i32, i32) {
    %c0_i32 = arith.constant 0 : i32
    %c0_i32_0 = arith.constant 0 : i32
    %c0_i32_1 = arith.constant 0 : i32
    return %c0_i32, %c0_i32_0 : i32, i32
  }
  func.func @transform_2(%arg0: i32) -> (i32, i32) {
    %c0_i32 = arith.constant 0 : i32
    %c0_i32_0 = arith.constant 0 : i32
    %c0_i32_1 = arith.constant 0 : i32
    return %c0_i32, %c0_i32_0 : i32, i32
  }
  func.func @transform_3(%arg0: i32) -> (i32, i32) {
    %c0_i32 = arith.constant 0 : i32
    %c0_i32_0 = arith.constant 0 : i32
    %c0_i32_1 = arith.constant 0 : i32
    return %c0_i32, %c0_i32_0 : i32, i32
  }
  func.func @transform_4(%arg0: i32) -> (i32, i32) {
    %c0_i32 = arith.constant 0 : i32
    %c0_i32_0 = arith.constant 0 : i32
    %c0_i32_1 = arith.constant 0 : i32
    return %c0_i32, %c0_i32_0 : i32, i32
  }
  func.func @transform_5(%arg0: i32) -> (i32, i32) {
    %c0_i32 = arith.constant 0 : i32
    %c0_i32_0 = arith.constant 0 : i32
    return %arg0, %c0_i32 : i32, i32
  }
}

</mosaic_0001>

<llo_original>
// kernel: tpu_custom_call.1
$region0: #{tpu_custom_call.1}
  #allocation0 [shape = 'u32[]', space=smem, size = 0x4, offset = 0x4, fixed_abs, tag = 'smem constant byte address 0x4 - core index']
  #allocation1 [shape = 'u32[144,128]{1,0:T(1,128)}', space=vmem, size = 0x12000, scoped, tag = 'internal scratch']
  %s0 = inlined_call_operand.hbm [shape: f32[2,256], index: 0, kind: input, shape index: {}]
  %s1 = inlined_call_operand.hbm [shape: bf16[256,1024], index: 1, kind: input, shape index: {}]
  %s2 = inlined_call_operand.hbm [shape: f32[1,1024], index: 2, kind: input, shape index: {}]
  %s3 = inlined_call_operand.hbm [shape: bf16[1024,128], index: 3, kind: input, shape index: {}]
  %s4 = inlined_call_operand.vmem [shape: f32[1,128], index: 4, kind: input, shape index: {}]
  %s5 = inlined_call_operand.hbm [shape: f32[2,128], index: 5, kind: output, shape index: {}]
  %s6 = sld [smem:[#allocation0]]
  $region46: #{tpu_custom_call.1} parent=0
    _
  %s8 = ssub.s32 1, %s6
  %s9 = scalar_select 0, %s8, %s6
  $region1: #{tpu_custom_call.1} parent=0
    #allocation2 [shape = 'u8[8192]{0}', space=vmem, size = 0x2000, scoped, tag = 'input window, operand 0, single buffered']
    #allocation3 [shape = 's32[1]{0}', space=sflag, size = 0x4, scoped, tag = 'scoped memory for tpu_custom_call.1']
    #allocation4 [shape = 's32[1]{0}', space=sflag, size = 0x4, scoped, tag = 'scoped memory for tpu_custom_call.1']
    #allocation5 [shape = 'u8[524288]{0}', space=vmem, size = 0x80000, scoped, tag = 'input window, operand 1, single buffered']
    #allocation6 [shape = 's32[1]{0}', space=sflag, size = 0x4, scoped, tag = 'scoped memory for tpu_custom_call.1']
    #allocation7 [shape = 'u8[4096]{0}', space=vmem, size = 0x1000, scoped, tag = 'input window, operand 2, single buffered']
    #allocation8 [shape = 'u8[262144]{0}', space=vmem, size = 0x40000, scoped, tag = 'input window, operand 3, single buffered']
    #allocation9 [shape = 's32[1]{0}', space=sflag, size = 0x4, scoped, tag = 'scoped memory for tpu_custom_call.1']
    #allocation10 [shape = 'u8[4096]{0}', space=vmem, size = 0x1000, scoped, tag = 'output window, operand 0, single buffered']
    %10 = vsyncpa [#allocation3], 0
    %11 = vsyncpa [#allocation6], 0
    %12 = vsyncpa [#allocation9], 0
    %13 = vsyncpa [#allocation4], 0
    // Predicated region
    $region2: #{tpu_custom_call.1} parent=1 // pred_check
      _
    $region3: #{tpu_custom_call.1} parent=1 // pred_check_branch
      %15 = sbr.rel (0) target = $region5
    $region4: #{tpu_custom_call.1} parent=1 // pred_region
      %s17 = ssub.s32 256, 64
      %18 = vsyncadd [#allocation3], %s17
      %s19 = sshll.u32 [#allocation2], 4
      %s20 = int_to_ptr.vmem [resolvable:$true] %s19
      %25 = dma.hbm_to_vmem [thread:$0]  %s0, 64, %s20, [#allocation3], 64, 64, 4
    $region5: #{tpu_custom_call.1} parent=1 // pred_fallthru
      _
    // Predicated region
    $region6: #{tpu_custom_call.1} parent=1 // pred_check
      _
    $region7: #{tpu_custom_call.1} parent=1 // pred_check_branch
      %27 = sbr.rel (0) target = $region9
    $region8: #{tpu_custom_call.1} parent=1 // pred_region
      %s29 = ssub.s32 16384, 16384
      %30 = vsyncadd [#allocation6], %s29
      %s31 = sshll.u32 [#allocation5], 4
      %s32 = int_to_ptr.vmem [resolvable:$true] %s31
      %37 = dma.hbm_to_vmem [thread:$0]  %s1, 16384, %s32, [#allocation6], 512, 512, 32
    $region9: #{tpu_custom_call.1} parent=1 // pred_fallthru
      _
    // Predicated region
    $region10: #{tpu_custom_call.1} parent=1 // pred_check
      _
    $region11: #{tpu_custom_call.1} parent=1 // pred_check_branch
      %39 = sbr.rel (0) target = $region13
    $region12: #{tpu_custom_call.1} parent=1 // pred_region
      %s41 = ssub.s32 128, 128
      %42 = vsyncadd [#allocation6], %s41
      %s44 = sshll.u32 [#allocation7], 4
      %s45 = int_to_ptr.vmem [resolvable:$true] %s44
      %47 = dma.hbm_to_vmem [thread:$0]  %s2, 128, %s45, [#allocation6]
    $region13: #{tpu_custom_call.1} parent=1 // pred_fallthru
      _
    // Predicated region
    $region14: #{tpu_custom_call.1} parent=1 // pred_check
      _
    $region15: #{tpu_custom_call.1} parent=1 // pred_check_branch
      %49 = sbr.rel (0) target = $region17
    $region16: #{tpu_custom_call.1} parent=1 // pred_region
      %s51 = ssub.s32 8192, 8192
      %52 = vsyncadd [#allocation9], %s51
      %s53 = sshll.u32 [#allocation8], 4
      %s54 = int_to_ptr.vmem [resolvable:$true] %s53
      %59 = dma.hbm_to_vmem [thread:$0]  %s3, 8192, %s54, [#allocation9], 64, 64, 4
    $region17: #{tpu_custom_call.1} parent=1 // pred_fallthru
      _
    // Predicated region
    $region18: #{tpu_custom_call.1} parent=1 // pred_check
      _
    $region19: #{tpu_custom_call.1} parent=1 // pred_check_branch
      %61 = sbr.rel (0) target = $region21
    $region20: #{tpu_custom_call.1} parent=1 // pred_region
      _
    $region21: #{tpu_custom_call.1} parent=1 // pred_fallthru
      _
    // Predicated region
    $region22: #{tpu_custom_call.1} parent=1 // pred_check
      _
    $region23: #{tpu_custom_call.1} parent=1 // pred_check_branch
      %63 = sbr.rel (0) target = $region25
    $region24: #{tpu_custom_call.1} parent=1 // pred_region
      %64 = dma.done [#allocation3], 256
    $region25: #{tpu_custom_call.1} parent=1 // pred_fallthru
      _
    // Predicated region
    $region26: #{tpu_custom_call.1} parent=1 // pred_check
      _
    $region27: #{tpu_custom_call.1} parent=1 // pred_check_branch
      %66 = sbr.rel (0) target = $region29
    $region28: #{tpu_custom_call.1} parent=1 // pred_region
      %67 = dma.done [#allocation6], 16384
    $region29: #{tpu_custom_call.1} parent=1 // pred_fallthru
      _
    // Predicated region
    $region30: #{tpu_custom_call.1} parent=1 // pred_check
      _
    $region31: #{tpu_custom_call.1} parent=1 // pred_check_branch
      %69 = sbr.rel (0) target = $region33
    $region32: #{tpu_custom_call.1} parent=1 // pred_region
      %70 = dma.done [#allocation6], 128
    $region33: #{tpu_custom_call.1} parent=1 // pred_fallthru
      _
    // Predicated region
    $region34: #{tpu_custom_call.1} parent=1 // pred_check
      _
    $region35: #{tpu_custom_call.1} parent=1 // pred_check_branch
      %72 = sbr.rel (0) target = $region37
    $region36: #{tpu_custom_call.1} parent=1 // pred_region
      %73 = dma.done [#allocation9], 8192
    $region37: #{tpu_custom_call.1} parent=1 // pred_fallthru
      _
    %v75 = vld [vmem:[#allocation2] sm:$0xf]
    %v76 = vld [vmem:[#allocation2 + $0x4] sm:$0xf]
    %v77 = vld [vmem:[#allocation2 + $0x8] sm:$0xf]
    %v78 = vld [vmem:[#allocation2 + $0xc] sm:$0xf]
    %v83 = vcombine.low %v75, %v76
    %v84 = vcombine.low %v77, %v78
    %v86 = vunpack.c.l.s4 1983009808
    %v87 = vunpack.c.0.s8 %v86
    %v88 = vlaneseq
    %v89 = vshrl.u32 %v88, 7
    %v90 = vsub.s32 %v87, %v89
    %v91 = vrot.slane %v83, %v90
    %v93 = vunpack.c.l.s4 1983009808
    %v94 = vunpack.c.0.s8 %v93
    %v95 = vlaneseq
    %v96 = vshrl.u32 %v95, 7
    %v97 = vsub.s32 %v94, %v96
    %v98 = vrot.slane %v84, %v97
    %v99 = vcombine.low %v91, %v98
    %v100 = vcombine.high %v91, %v98
    %v103 = vpack.c.bf16 %v99, %v99
    %v104 = vpack.c.bf16 %v100, %v100
    %v105 = vld [vmem:[#allocation5] sm:$0xff]
    %v106 = vld [vmem:[#allocation5 + $0x8] sm:$0xff]
    %v107 = vld [vmem:[#allocation5 + $0x10] sm:$0xff]
    %v108 = vld [vmem:[#allocation5 + $0x18] sm:$0xff]
    %v109 = vld [vmem:[#allocation5 + $0x20] sm:$0xff]
    %v110 = vld [vmem:[#allocation5 + $0x28] sm:$0xff]
    %v111 = vld [vmem:[#allocation5 + $0x30] sm:$0xff]
    %v112 = vld [vmem:[#allocation5 + $0x38] sm:$0xff]
    %v113 = vld [vmem:[#allocation5 + $0x40] sm:$0xff]
    %v114 = vld [vmem:[#allocation5 + $0x48] sm:$0xff]
    %v115 = vld [vmem:[#allocation5 + $0x50] sm:$0xff]
    %v116 = vld [vmem:[#allocation5 + $0x58] sm:$0xff]
    %v117 = vld [vmem:[#allocation5 + $0x60] sm:$0xff]
    %v118 = vld [vmem:[#allocation5 + $0x68] sm:$0xff]
    %v119 = vld [vmem:[#allocation5 + $0x70] sm:$0xff]
    %v120 = vld [vmem:[#allocation5 + $0x78] sm:$0xff]
    %v121 = vld [vmem:[#allocation5 + $0x80] sm:$0xff]
    %v122 = vld [vmem:[#allocation5 + $0x88] sm:$0xff]
    %v123 = vld [vmem:[#allocation5 + $0x90] sm:$0xff]
    %v124 = vld [vmem:[#allocation5 + $0x98] sm:$0xff]
    %v125 = vld [vmem:[#allocation5 + $0xa0] sm:$0xff]
    %v126 = vld [vmem:[#allocation5 + $0xa8] sm:$0xff]
    %v127 = vld [vmem:[#allocation5 + $0xb0] sm:$0xff]
    %v128 = vld [vmem:[#allocation5 + $0xb8] sm:$0xff]
    %v129 = vld [vmem:[#allocation5 + $0xc0] sm:$0xff]
    %v130 = vld [vmem:[#allocation5 + $0xc8] sm:$0xff]
    %v131 = vld [vmem:[#allocation5 + $0xd0] sm:$0xff]
    %v132 = vld [vmem:[#allocation5 + $0xd8] sm:$0xff]
    %v133 = vld [vmem:[#allocation5 + $0xe0] sm:$0xff]
    %v134 = vld [vmem:[#allocation5 + $0xe8] sm:$0xff]
    %v135 = vld [vmem:[#allocation5 + $0xf0] sm:$0xff]
    %v136 = vld [vmem:[#allocation5 + $0xf8] sm:$0xff]
    %v137 = vld [vmem:[#allocation5 + $0x100] sm:$0xff]
    %v138 = vld [vmem:[#allocation5 + $0x108] sm:$0xff]
    %v139 = vld [vmem:[#allocation5 + $0x110] sm:$0xff]
    %v140 = vld [vmem:[#allocation5 + $0x118] sm:$0xff]
    %v141 = vld [vmem:[#allocation5 + $0x120] sm:$0xff]
    %v142 = vld [vmem:[#allocation5 + $0x128] sm:$0xff]
    %v143 = vld [vmem:[#allocation5 + $0x130] sm:$0xff]
    %v144 = vld [vmem:[#allocation5 + $0x138] sm:$0xff]
    %v145 = vld [vmem:[#allocation5 + $0x140] sm:$0xff]
    %v146 = vld [vmem:[#allocation5 + $0x148] sm:$0xff]
    %v147 = vld [vmem:[#allocation5 + $0x150] sm:$0xff]
    %v148 = vld [vmem:[#allocation5 + $0x158] sm:$0xff]
    %v149 = vld [vmem:[#allocation5 + $0x160] sm:$0xff]
    %v150 = vld [vmem:[#allocation5 + $0x168] sm:$0xff]
    %v151 = vld [vmem:[#allocation5 + $0x170] sm:$0xff]
    %v152 = vld [vmem:[#allocation5 + $0x178] sm:$0xff]
    %v153 = vld [vmem:[#allocation5 + $0x180] sm:$0xff]
    %v154 = vld [vmem:[#allocation5 + $0x188] sm:$0xff]
    %v155 = vld [vmem:[#allocation5 + $0x190] sm:$0xff]
    %v156 = vld [vmem:[#allocation5 + $0x198] sm:$0xff]
    %v157 = vld [vmem:[#allocation5 + $0x1a0] sm:$0xff]
    %v158 = vld [vmem:[#allocation5 + $0x1a8] sm:$0xff]
    %v159 = vld [vmem:[#allocation5 + $0x1b0] sm:$0xff]
    %v160 = vld [vmem:[#allocation5 + $0x1b8] sm:$0xff]
    %v161 = vld [vmem:[#allocation5 + $0x1c0] sm:$0xff]
    %v162 = vld [vmem:[#allocation5 + $0x1c8] sm:$0xff]
    %v163 = vld [vmem:[#allocation5 + $0x1d0] sm:$0xff]
    %v164 = vld [vmem:[#allocation5 + $0x1d8] sm:$0xff]
    %v165 = vld [vmem:[#allocation5 + $0x1e0] sm:$0xff]
    %v166 = vld [vmem:[#allocation5 + $0x1e8] sm:$0xff]
    %v167 = vld [vmem:[#allocation5 + $0x1f0] sm:$0xff]
    %v168 = vld [vmem:[#allocation5 + $0x1f8] sm:$0xff]
    %v169 = vld [vmem:[#allocation5 + $0x200] sm:$0xff]
    %v170 = vld [vmem:[#allocation5 + $0x208] sm:$0xff]
    %v171 = vld [vmem:[#allocation5 + $0x210] sm:$0xff]
    %v172 = vld [vmem:[#allocation5 + $0x218] sm:$0xff]
    %v173 = vld [vmem:[#allocation5 + $0x220] sm:$0xff]
    %v174 = vld [vmem:[#allocation5 + $0x228] sm:$0xff]
    %v175 = vld [vmem:[#allocation5 + $0x230] sm:$0xff]
    %v176 = vld [vmem:[#allocation5 + $0x238] sm:$0xff]
    %v177 = vld [vmem:[#allocation5 + $0x240] sm:$0xff]
    %v178 = vld [vmem:[#allocation5 + $0x248] sm:$0xff]
    %v179 = vld [vmem:[#allocation5 + $0x250] sm:$0xff]
    %v180 = vld [vmem:[#allocation5 + $0x258] sm:$0xff]
    %v181 = vld [vmem:[#allocation5 + $0x260] sm:$0xff]
    %v182 = vld [vmem:[#allocation5 + $0x268] sm:$0xff]
    %v183 = vld [vmem:[#allocation5 + $0x270] sm:$0xff]
    %v184 = vld [vmem:[#allocation5 + $0x278] sm:$0xff]
    %v185 = vld [vmem:[#allocation5 + $0x280] sm:$0xff]
    %v186 = vld [vmem:[#allocation5 + $0x288] sm:$0xff]
    %v187 = vld [vmem:[#allocation5 + $0x290] sm:$0xff]
    %v188 = vld [vmem:[#allocation5 + $0x298] sm:$0xff]
    %v189 = vld [vmem:[#allocation5 + $0x2a0] sm:$0xff]
    %v190 = vld [vmem:[#allocation5 + $0x2a8] sm:$0xff]
    %v191 = vld [vmem:[#allocation5 + $0x2b0] sm:$0xff]
    %v192 = vld [vmem:[#allocation5 + $0x2b8] sm:$0xff]
    %v193 = vld [vmem:[#allocation5 + $0x2c0] sm:$0xff]
    %v194 = vld [vmem:[#allocation5 + $0x2c8] sm:$0xff]
    %v195 = vld [vmem:[#allocation5 + $0x2d0] sm:$0xff]
    %v196 = vld [vmem:[#allocation5 + $0x2d8] sm:$0xff]
    %v197 = vld [vmem:[#allocation5 + $0x2e0] sm:$0xff]
    %v198 = vld [vmem:[#allocation5 + $0x2e8] sm:$0xff]
    %v199 = vld [vmem:[#allocation5 + $0x2f0] sm:$0xff]
    %v200 = vld [vmem:[#allocation5 + $0x2f8] sm:$0xff]
    %v201 = vld [vmem:[#allocation5 + $0x300] sm:$0xff]
    %v202 = vld [vmem:[#allocation5 + $0x308] sm:$0xff]
    %v203 = vld [vmem:[#allocation5 + $0x310] sm:$0xff]
    %v204 = vld [vmem:[#allocation5 + $0x318] sm:$0xff]
    %v205 = vld [vmem:[#allocation5 + $0x320] sm:$0xff]
    %v206 = vld [vmem:[#allocation5 + $0x328] sm:$0xff]
    %v207 = vld [vmem:[#allocation5 + $0x330] sm:$0xff]
    %v208 = vld [vmem:[#allocation5 + $0x338] sm:$0xff]
    %v209 = vld [vmem:[#allocation5 + $0x340] sm:$0xff]
    %v210 = vld [vmem:[#allocation5 + $0x348] sm:$0xff]
    %v211 = vld [vmem:[#allocation5 + $0x350] sm:$0xff]
    %v212 = vld [vmem:[#allocation5 + $0x358] sm:$0xff]
    %v213 = vld [vmem:[#allocation5 + $0x360] sm:$0xff]
    %v214 = vld [vmem:[#allocation5 + $0x368] sm:$0xff]
    %v215 = vld [vmem:[#allocation5 + $0x370] sm:$0xff]
    %v216 = vld [vmem:[#allocation5 + $0x378] sm:$0xff]
    %v217 = vld [vmem:[#allocation5 + $0x380] sm:$0xff]
    %v218 = vld [vmem:[#allocation5 + $0x388] sm:$0xff]
    %v219 = vld [vmem:[#allocation5 + $0x390] sm:$0xff]
    %v220 = vld [vmem:[#allocation5 + $0x398] sm:$0xff]
    %v221 = vld [vmem:[#allocation5 + $0x3a0] sm:$0xff]
    %v222 = vld [vmem:[#allocation5 + $0x3a8] sm:$0xff]
    %v223 = vld [vmem:[#allocation5 + $0x3b0] sm:$0xff]
    %v224 = vld [vmem:[#allocation5 + $0x3b8] sm:$0xff]
    %v225 = vld [vmem:[#allocation5 + $0x3c0] sm:$0xff]
    %v226 = vld [vmem:[#allocation5 + $0x3c8] sm:$0xff]
    %v227 = vld [vmem:[#allocation5 + $0x3d0] sm:$0xff]
    %v228 = vld [vmem:[#allocation5 + $0x3d8] sm:$0xff]
    %v229 = vld [vmem:[#allocation5 + $0x3e0] sm:$0xff]
    %v230 = vld [vmem:[#allocation5 + $0x3e8] sm:$0xff]
    %v231 = vld [vmem:[#allocation5 + $0x3f0] sm:$0xff]
    %v232 = vld [vmem:[#allocation5 + $0x3f8] sm:$0xff]
    %v233 = vld [vmem:[#allocation7] sm:$0xff]
    %v235 = vlaneseq
    %v236 = vshrl.u32 %v235, 7
    %v237 = vsub.s32 0, %v236
    %v238 = vrot.slane %v233, %v237
    %v239 = vlaneseq
    %v240 = vshrl.u32 %v239, 7
    %v241 = vsub.s32 1, %v240
    %v242 = vrot.slane %v233, %v241
    %v243 = vlaneseq
    %v244 = vshrl.u32 %v243, 7
    %v245 = vsub.s32 2, %v244
    %v246 = vrot.slane %v233, %v245
    %v247 = vlaneseq
    %v248 = vshrl.u32 %v247, 7
    %v249 = vsub.s32 3, %v248
    %v250 = vrot.slane %v233, %v249
    %v251 = vlaneseq
    %v252 = vshrl.u32 %v251, 7
    %v253 = vsub.s32 4, %v252
    %v254 = vrot.slane %v233, %v253
    %v255 = vlaneseq
    %v256 = vshrl.u32 %v255, 7
    %v257 = vsub.s32 5, %v256
    %v258 = vrot.slane %v233, %v257
    %v259 = vlaneseq
    %v260 = vshrl.u32 %v259, 7
    %v261 = vsub.s32 6, %v260
    %v262 = vrot.slane %v233, %v261
    %v263 = vlaneseq
    %v264 = vshrl.u32 %v263, 7
    %v265 = vsub.s32 7, %v264
    %v266 = vrot.slane %v233, %v265
    %v403 = vunpack.c.l.b16 %v105
    %v404 = vunpack.c.h.b16 %v105
    %v405 = vunpack.c.l.b16 %v106
    %v406 = vunpack.c.h.b16 %v106
    %v407 = vunpack.c.l.b16 %v107
    %v408 = vunpack.c.h.b16 %v107
    %v409 = vunpack.c.l.b16 %v108
    %v410 = vunpack.c.h.b16 %v108
    %v411 = vunpack.c.l.b16 %v109
    %v412 = vunpack.c.h.b16 %v109
    %v413 = vunpack.c.l.b16 %v110
    %v414 = vunpack.c.h.b16 %v110
    %v415 = vunpack.c.l.b16 %v111
    %v416 = vunpack.c.h.b16 %v111
    %v417 = vunpack.c.l.b16 %v112
    %v418 = vunpack.c.h.b16 %v112
    %v419 = vunpack.c.l.b16 %v113
    %v420 = vunpack.c.h.b16 %v113
    %v421 = vunpack.c.l.b16 %v114
    %v422 = vunpack.c.h.b16 %v114
    %v423 = vunpack.c.l.b16 %v115
    %v424 = vunpack.c.h.b16 %v115
    %v425 = vunpack.c.l.b16 %v116
    %v426 = vunpack.c.h.b16 %v116
    %v427 = vunpack.c.l.b16 %v117
    %v428 = vunpack.c.h.b16 %v117
    %v429 = vunpack.c.l.b16 %v118
    %v430 = vunpack.c.h.b16 %v118
    %v431 = vunpack.c.l.b16 %v119
    %v432 = vunpack.c.h.b16 %v119
    %v433 = vunpack.c.l.b16 %v120
    %v434 = vunpack.c.h.b16 %v120
    %v435 = vunpack.c.l.b16 %v121
    %v436 = vunpack.c.h.b16 %v121
    %v437 = vunpack.c.l.b16 %v122
    %v438 = vunpack.c.h.b16 %v122
    %v439 = vunpack.c.l.b16 %v123
    %v440 = vunpack.c.h.b16 %v123
    %v441 = vunpack.c.l.b16 %v124
    %v442 = vunpack.c.h.b16 %v124
    %v443 = vunpack.c.l.b16 %v125
    %v444 = vunpack.c.h.b16 %v125
    %v445 = vunpack.c.l.b16 %v126
    %v446 = vunpack.c.h.b16 %v126
    %v447 = vunpack.c.l.b16 %v127
    %v448 = vunpack.c.h.b16 %v127
    %v449 = vunpack.c.l.b16 %v128
    %v450 = vunpack.c.h.b16 %v128
    %v451 = vunpack.c.l.b16 %v129
    %v452 = vunpack.c.h.b16 %v129
    %v453 = vunpack.c.l.b16 %v130
    %v454 = vunpack.c.h.b16 %v130
    %v455 = vunpack.c.l.b16 %v131
    %v456 = vunpack.c.h.b16 %v131
    %v457 = vunpack.c.l.b16 %v132
    %v458 = vunpack.c.h.b16 %v132
    %v459 = vunpack.c.l.b16 %v133
    %v460 = vunpack.c.h.b16 %v133
    %v461 = vunpack.c.l.b16 %v134
    %v462 = vunpack.c.h.b16 %v134
    %v463 = vunpack.c.l.b16 %v135
    %v464 = vunpack.c.h.b16 %v135
    %v465 = vunpack.c.l.b16 %v136
    %v466 = vunpack.c.h.b16 %v136
    %v467 = vunpack.c.l.b16 %v137
    %v468 = vunpack.c.h.b16 %v137
    %v469 = vunpack.c.l.b16 %v138
    %v470 = vunpack.c.h.b16 %v138
    %v471 = vunpack.c.l.b16 %v139
    %v472 = vunpack.c.h.b16 %v139
    %v473 = vunpack.c.l.b16 %v140
    %v474 = vunpack.c.h.b16 %v140
    %v475 = vunpack.c.l.b16 %v141
    %v476 = vunpack.c.h.b16 %v141
    %v477 = vunpack.c.l.b16 %v142
    %v478 = vunpack.c.h.b16 %v142
    %v479 = vunpack.c.l.b16 %v143
    %v480 = vunpack.c.h.b16 %v143
    %v481 = vunpack.c.l.b16 %v144
    %v482 = vunpack.c.h.b16 %v144
    %v483 = vunpack.c.l.b16 %v145
    %v484 = vunpack.c.h.b16 %v145
    %v485 = vunpack.c.l.b16 %v146
    %v486 = vunpack.c.h.b16 %v146
    %v487 = vunpack.c.l.b16 %v147
    %v488 = vunpack.c.h.b16 %v147
    %v489 = vunpack.c.l.b16 %v148
    %v490 = vunpack.c.h.b16 %v148
    %v491 = vunpack.c.l.b16 %v149
    %v492 = vunpack.c.h.b16 %v149
    %v493 = vunpack.c.l.b16 %v150
    %v494 = vunpack.c.h.b16 %v150
    %v495 = vunpack.c.l.b16 %v151
    %v496 = vunpack.c.h.b16 %v151
    %v497 = vunpack.c.l.b16 %v152
    %v498 = vunpack.c.h.b16 %v152
    %v499 = vunpack.c.l.b16 %v153
    %v500 = vunpack.c.h.b16 %v153
    %v501 = vunpack.c.l.b16 %v154
    %v502 = vunpack.c.h.b16 %v154
    %v503 = vunpack.c.l.b16 %v155
    %v504 = vunpack.c.h.b16 %v155
    %v505 = vunpack.c.l.b16 %v156
    %v506 = vunpack.c.h.b16 %v156
    %v507 = vunpack.c.l.b16 %v157
    %v508 = vunpack.c.h.b16 %v157
    %v509 = vunpack.c.l.b16 %v158
    %v510 = vunpack.c.h.b16 %v158
    %v511 = vunpack.c.l.b16 %v159
    %v512 = vunpack.c.h.b16 %v159
    %v513 = vunpack.c.l.b16 %v160
    %v514 = vunpack.c.h.b16 %v160
    %v515 = vunpack.c.l.b16 %v161
    %v516 = vunpack.c.h.b16 %v161
    %v517 = vunpack.c.l.b16 %v162
    %v518 = vunpack.c.h.b16 %v162
    %v519 = vunpack.c.l.b16 %v163
    %v520 = vunpack.c.h.b16 %v163
    %v521 = vunpack.c.l.b16 %v164
    %v522 = vunpack.c.h.b16 %v164
    %v523 = vunpack.c.l.b16 %v165
    %v524 = vunpack.c.h.b16 %v165
    %v525 = vunpack.c.l.b16 %v166
    %v526 = vunpack.c.h.b16 %v166
    %v527 = vunpack.c.l.b16 %v167
    %v528 = vunpack.c.h.b16 %v167
    %v529 = vunpack.c.l.b16 %v168
    %v530 = vunpack.c.h.b16 %v168
    %v531 = vunpack.c.l.b16 %v169
    %v532 = vunpack.c.h.b16 %v169
    %v533 = vunpack.c.l.b16 %v170
    %v534 = vunpack.c.h.b16 %v170
    %v535 = vunpack.c.l.b16 %v171
    %v536 = vunpack.c.h.b16 %v171
    %v537 = vunpack.c.l.b16 %v172
    %v538 = vunpack.c.h.b16 %v172
    %v539 = vunpack.c.l.b16 %v173
    %v540 = vunpack.c.h.b16 %v173
    %v541 = vunpack.c.l.b16 %v174
    %v542 = vunpack.c.h.b16 %v174
    %v543 = vunpack.c.l.b16 %v175
    %v544 = vunpack.c.h.b16 %v175
    %v545 = vunpack.c.l.b16 %v176
    %v546 = vunpack.c.h.b16 %v176
    %v547 = vunpack.c.l.b16 %v177
    %v548 = vunpack.c.h.b16 %v177
    %v549 = vunpack.c.l.b16 %v178
    %v550 = vunpack.c.h.b16 %v178
    %v551 = vunpack.c.l.b16 %v179
    %v552 = vunpack.c.h.b16 %v179
    %v553 = vunpack.c.l.b16 %v180
    %v554 = vunpack.c.h.b16 %v180
    %v555 = vunpack.c.l.b16 %v181
    %v556 = vunpack.c.h.b16 %v181
    %v557 = vunpack.c.l.b16 %v182
    %v558 = vunpack.c.h.b16 %v182
    %v559 = vunpack.c.l.b16 %v183
    %v560 = vunpack.c.h.b16 %v183
    %v561 = vunpack.c.l.b16 %v184
    %v562 = vunpack.c.h.b16 %v184
    %v563 = vunpack.c.l.b16 %v185
    %v564 = vunpack.c.h.b16 %v185
    %v565 = vunpack.c.l.b16 %v186
    %v566 = vunpack.c.h.b16 %v186
    %v567 = vunpack.c.l.b16 %v187
    %v568 = vunpack.c.h.b16 %v187
    %v569 = vunpack.c.l.b16 %v188
    %v570 = vunpack.c.h.b16 %v188
    %v571 = vunpack.c.l.b16 %v189
    %v572 = vunpack.c.h.b16 %v189
    %v573 = vunpack.c.l.b16 %v190
    %v574 = vunpack.c.h.b16 %v190
    %v575 = vunpack.c.l.b16 %v191
    %v576 = vunpack.c.h.b16 %v191
    %v577 = vunpack.c.l.b16 %v192
    %v578 = vunpack.c.h.b16 %v192
    %v579 = vunpack.c.l.b16 %v193
    %v580 = vunpack.c.h.b16 %v193
    %v581 = vunpack.c.l.b16 %v194
    %v582 = vunpack.c.h.b16 %v194
    %v583 = vunpack.c.l.b16 %v195
    %v584 = vunpack.c.h.b16 %v195
    %v585 = vunpack.c.l.b16 %v196
    %v586 = vunpack.c.h.b16 %v196
    %v587 = vunpack.c.l.b16 %v197
    %v588 = vunpack.c.h.b16 %v197
    %v589 = vunpack.c.l.b16 %v198
    %v590 = vunpack.c.h.b16 %v198
    %v591 = vunpack.c.l.b16 %v199
    %v592 = vunpack.c.h.b16 %v199
    %v593 = vunpack.c.l.b16 %v200
    %v594 = vunpack.c.h.b16 %v200
    %v595 = vunpack.c.l.b16 %v201
    %v596 = vunpack.c.h.b16 %v201
    %v597 = vunpack.c.l.b16 %v202
    %v598 = vunpack.c.h.b16 %v202
    %v599 = vunpack.c.l.b16 %v203
    %v600 = vunpack.c.h.b16 %v203
    %v601 = vunpack.c.l.b16 %v204
    %v602 = vunpack.c.h.b16 %v204
    %v603 = vunpack.c.l.b16 %v205
    %v604 = vunpack.c.h.b16 %v205
    %v605 = vunpack.c.l.b16 %v206
    %v606 = vunpack.c.h.b16 %v206
    %v607 = vunpack.c.l.b16 %v207
    %v608 = vunpack.c.h.b16 %v207
    %v609 = vunpack.c.l.b16 %v208
    %v610 = vunpack.c.h.b16 %v208
    %v611 = vunpack.c.l.b16 %v209
    %v612 = vunpack.c.h.b16 %v209
    %v613 = vunpack.c.l.b16 %v210
    %v614 = vunpack.c.h.b16 %v210
    %v615 = vunpack.c.l.b16 %v211
    %v616 = vunpack.c.h.b16 %v211
    %v617 = vunpack.c.l.b16 %v212
    %v618 = vunpack.c.h.b16 %v212
    %v619 = vunpack.c.l.b16 %v213
    %v620 = vunpack.c.h.b16 %v213
    %v621 = vunpack.c.l.b16 %v214
    %v622 = vunpack.c.h.b16 %v214
    %v623 = vunpack.c.l.b16 %v215
    %v624 = vunpack.c.h.b16 %v215
    %v625 = vunpack.c.l.b16 %v216
    %v626 = vunpack.c.h.b16 %v216
    %v627 = vunpack.c.l.b16 %v217
    %v628 = vunpack.c.h.b16 %v217
    %v629 = vunpack.c.l.b16 %v218
    %v630 = vunpack.c.h.b16 %v218
    %v631 = vunpack.c.l.b16 %v219
    %v632 = vunpack.c.h.b16 %v219
    %v633 = vunpack.c.l.b16 %v220
    %v634 = vunpack.c.h.b16 %v220
    %v635 = vunpack.c.l.b16 %v221
    %v636 = vunpack.c.h.b16 %v221
    %v637 = vunpack.c.l.b16 %v222
    %v638 = vunpack.c.h.b16 %v222
    %v639 = vunpack.c.l.b16 %v223
    %v640 = vunpack.c.h.b16 %v223
    %v641 = vunpack.c.l.b16 %v224
    %v642 = vunpack.c.h.b16 %v224
    %v643 = vunpack.c.l.b16 %v225
    %v644 = vunpack.c.h.b16 %v225
    %v645 = vunpack.c.l.b16 %v226
    %v646 = vunpack.c.h.b16 %v226
    %v647 = vunpack.c.l.b16 %v227
    %v648 = vunpack.c.h.b16 %v227
    %v649 = vunpack.c.l.b16 %v228
    %v650 = vunpack.c.h.b16 %v228
    %v651 = vunpack.c.l.b16 %v229
    %v652 = vunpack.c.h.b16 %v229
    %v653 = vunpack.c.l.b16 %v230
    %v654 = vunpack.c.h.b16 %v230
    %v655 = vunpack.c.l.b16 %v231
    %v656 = vunpack.c.h.b16 %v231
    %v657 = vunpack.c.l.b16 %v232
    %v658 = vunpack.c.h.b16 %v232
    %v659 = vpack.c.b16 %v411, %v403
    %v660 = vpack.c.b16 %v412, %v404
    %v661 = vpack.c.b16 %v413, %v405
    %v662 = vpack.c.b16 %v414, %v406
    %v663 = vpack.c.b16 %v415, %v407
    %v664 = vpack.c.b16 %v416, %v408
    %v665 = vpack.c.b16 %v417, %v409
    %v666 = vpack.c.b16 %v418, %v410
    %v667 = vpack.c.b16 %v427, %v419
    %v668 = vpack.c.b16 %v428, %v420
    %v669 = vpack.c.b16 %v429, %v421
    %v670 = vpack.c.b16 %v430, %v422
    %v671 = vpack.c.b16 %v431, %v423
    %v672 = vpack.c.b16 %v432, %v424
    %v673 = vpack.c.b16 %v433, %v425
    %v674 = vpack.c.b16 %v434, %v426
    %v675 = vpack.c.b16 %v443, %v435
    %v676 = vpack.c.b16 %v444, %v436
    %v677 = vpack.c.b16 %v445, %v437
    %v678 = vpack.c.b16 %v446, %v438
    %v679 = vpack.c.b16 %v447, %v439
    %v680 = vpack.c.b16 %v448, %v440
    %v681 = vpack.c.b16 %v449, %v441
    %v682 = vpack.c.b16 %v450, %v442
    %v683 = vpack.c.b16 %v459, %v451
    %v684 = vpack.c.b16 %v460, %v452
    %v685 = vpack.c.b16 %v461, %v453
    %v686 = vpack.c.b16 %v462, %v454
    %v687 = vpack.c.b16 %v463, %v455
    %v688 = vpack.c.b16 %v464, %v456
    %v689 = vpack.c.b16 %v465, %v457
    %v690 = vpack.c.b16 %v466, %v458
    %v691 = vpack.c.b16 %v475, %v467
    %v692 = vpack.c.b16 %v476, %v468
    %v693 = vpack.c.b16 %v477, %v469
    %v694 = vpack.c.b16 %v478, %v470
    %v695 = vpack.c.b16 %v479, %v471
    %v696 = vpack.c.b16 %v480, %v472
    %v697 = vpack.c.b16 %v481, %v473
    %v698 = vpack.c.b16 %v482, %v474
    %v699 = vpack.c.b16 %v491, %v483
    %v700 = vpack.c.b16 %v492, %v484
    %v701 = vpack.c.b16 %v493, %v485
    %v702 = vpack.c.b16 %v494, %v486
    %v703 = vpack.c.b16 %v495, %v487
    %v704 = vpack.c.b16 %v496, %v488
    %v705 = vpack.c.b16 %v497, %v489
    %v706 = vpack.c.b16 %v498, %v490
    %v707 = vpack.c.b16 %v507, %v499
    %v708 = vpack.c.b16 %v508, %v500
    %v709 = vpack.c.b16 %v509, %v501
    %v710 = vpack.c.b16 %v510, %v502
    %v711 = vpack.c.b16 %v511, %v503
    %v712 = vpack.c.b16 %v512, %v504
    %v713 = vpack.c.b16 %v513, %v505
    %v714 = vpack.c.b16 %v514, %v506
    %v715 = vpack.c.b16 %v523, %v515
    %v716 = vpack.c.b16 %v524, %v516
    %v717 = vpack.c.b16 %v525, %v517
    %v718 = vpack.c.b16 %v526, %v518
    %v719 = vpack.c.b16 %v527, %v519
    %v720 = vpack.c.b16 %v528, %v520
    %v721 = vpack.c.b16 %v529, %v521
    %v722 = vpack.c.b16 %v530, %v522
    %v723 = vpack.c.b16 %v539, %v531
    %v724 = vpack.c.b16 %v540, %v532
    %v725 = vpack.c.b16 %v541, %v533
    %v726 = vpack.c.b16 %v542, %v534
    %v727 = vpack.c.b16 %v543, %v535
    %v728 = vpack.c.b16 %v544, %v536
    %v729 = vpack.c.b16 %v545, %v537
    %v730 = vpack.c.b16 %v546, %v538
    %v731 = vpack.c.b16 %v555, %v547
    %v732 = vpack.c.b16 %v556, %v548
    %v733 = vpack.c.b16 %v557, %v549
    %v734 = vpack.c.b16 %v558, %v550
    %v735 = vpack.c.b16 %v559, %v551
    %v736 = vpack.c.b16 %v560, %v552
    %v737 = vpack.c.b16 %v561, %v553
    %v738 = vpack.c.b16 %v562, %v554
    %v739 = vpack.c.b16 %v571, %v563
    %v740 = vpack.c.b16 %v572, %v564
    %v741 = vpack.c.b16 %v573, %v565
    %v742 = vpack.c.b16 %v574, %v566
    %v743 = vpack.c.b16 %v575, %v567
    %v744 = vpack.c.b16 %v576, %v568
    %v745 = vpack.c.b16 %v577, %v569
    %v746 = vpack.c.b16 %v578, %v570
    %v747 = vpack.c.b16 %v587, %v579
    %v748 = vpack.c.b16 %v588, %v580
    %v749 = vpack.c.b16 %v589, %v581
    %v750 = vpack.c.b16 %v590, %v582
    %v751 = vpack.c.b16 %v591, %v583
    %v752 = vpack.c.b16 %v592, %v584
    %v753 = vpack.c.b16 %v593, %v585
    %v754 = vpack.c.b16 %v594, %v586
    %v755 = vpack.c.b16 %v603, %v595
    %v756 = vpack.c.b16 %v604, %v596
    %v757 = vpack.c.b16 %v605, %v597
    %v758 = vpack.c.b16 %v606, %v598
    %v759 = vpack.c.b16 %v607, %v599
    %v760 = vpack.c.b16 %v608, %v600
    %v761 = vpack.c.b16 %v609, %v601
    %v762 = vpack.c.b16 %v610, %v602
    %v763 = vpack.c.b16 %v619, %v611
    %v764 = vpack.c.b16 %v620, %v612
    %v765 = vpack.c.b16 %v621, %v613
    %v766 = vpack.c.b16 %v622, %v614
    %v767 = vpack.c.b16 %v623, %v615
    %v768 = vpack.c.b16 %v624, %v616
    %v769 = vpack.c.b16 %v625, %v617
    %v770 = vpack.c.b16 %v626, %v618
    %v771 = vpack.c.b16 %v635, %v627
    %v772 = vpack.c.b16 %v636, %v628
    %v773 = vpack.c.b16 %v637, %v629
    %v774 = vpack.c.b16 %v638, %v630
    %v775 = vpack.c.b16 %v639, %v631
    %v776 = vpack.c.b16 %v640, %v632
    %v777 = vpack.c.b16 %v641, %v633
    %v778 = vpack.c.b16 %v642, %v634
    %v779 = vpack.c.b16 %v651, %v643
    %v780 = vpack.c.b16 %v652, %v644
    %v781 = vpack.c.b16 %v653, %v645
    %v782 = vpack.c.b16 %v654, %v646
    %v783 = vpack.c.b16 %v655, %v647
    %v784 = vpack.c.b16 %v656, %v648
    %v785 = vpack.c.b16 %v657, %v649
    %v786 = vpack.c.b16 %v658, %v650
    %915 = vmatprep.subr.bf16.mxu0 %v716
    %916 = vmatpush1.bf16.msra.mxu0 %v715
    %917 = vmatprep.subr.bf16.mxu0 %v708
    %918 = vmatpush1.bf16.msra.mxu0 %v707
    %919 = vmatprep.subr.bf16.mxu0 %v700
    %920 = vmatpush1.bf16.msra.mxu0 %v699
    %921 = vmatprep.subr.bf16.mxu0 %v692
    %922 = vmatpush1.bf16.msra.mxu0 %v691
    %923 = vmatprep.subr.bf16.mxu0 %v684
    %924 = vmatpush1.bf16.msra.mxu0 %v683
    %925 = vmatprep.subr.bf16.mxu0 %v676
    %926 = vmatpush1.bf16.msra.mxu0 %v675
    %927 = vmatprep.subr.bf16.mxu0 %v668
    %928 = vmatpush1.bf16.msra.mxu0 %v667
    %929 = vmatprep.subr.bf16.mxu0 %v660
    %930 = vmatpush1.bf16.msra.mxu0 %v659
    %931 = vmatprep.subr.bf16.mxu0 %v780
    %932 = vmatpush2.bf16.msra.mxu0 %v779
    %933 = vmatprep.subr.bf16.mxu0 %v772
    %934 = vmatpush2.bf16.msra.mxu0 %v771
    %935 = vmatprep.subr.bf16.mxu0 %v764
    %936 = vmatpush2.bf16.msra.mxu0 %v763
    %937 = vmatprep.subr.bf16.mxu0 %v756
    %938 = vmatpush2.bf16.msra.mxu0 %v755
    %939 = vmatprep.subr.bf16.mxu0 %v748
    %940 = vmatpush2.bf16.msra.mxu0 %v747
    %941 = vmatprep.subr.bf16.mxu0 %v740
    %942 = vmatpush2.bf16.msra.mxu0 %v739
    %943 = vmatprep.subr.bf16.mxu0 %v732
    %944 = vmatpush2.bf16.msra.mxu0 %v731
    %945 = vmatprep.subr.bf16.mxu0 %v724
    %946 = vmatpush2.bf16.msra.mxu0 %v723
    %947 = vmatprep.mubr.bf16.mxu0 %v104
    %948 = vmatmul.mubr.bf16.gmra.mxu0 %v103
    %v949 = vpop.f32.mrf.mxu0
    %v950 = vadd.f32 %v238, %v949
    %v951 = vpop.f32.mrf.mxu0
    %v952 = vadd.f32 %v242, %v951
    %v953 = vpop.f32.mrf.mxu0
    %v954 = vpop.f32.mrf.mxu0
    %955 = vdwg.mxu0
    %956 = vmatprep.subr.bf16.mxu0 %v718
    %957 = vmatpush1.bf16.msra.mxu0 %v717
    %958 = vmatprep.subr.bf16.mxu0 %v710
    %959 = vmatpush1.bf16.msra.mxu0 %v709
    %960 = vmatprep.subr.bf16.mxu0 %v702
    %961 = vmatpush1.bf16.msra.mxu0 %v701
    %962 = vmatprep.subr.bf16.mxu0 %v694
    %963 = vmatpush1.bf16.msra.mxu0 %v693
    %964 = vmatprep.subr.bf16.mxu0 %v686
    %965 = vmatpush1.bf16.msra.mxu0 %v685
    %966 = vmatprep.subr.bf16.mxu0 %v678
    %967 = vmatpush1.bf16.msra.mxu0 %v677
    %968 = vmatprep.subr.bf16.mxu0 %v670
    %969 = vmatpush1.bf16.msra.mxu0 %v669
    %970 = vmatprep.subr.bf16.mxu0 %v662
    %971 = vmatpush1.bf16.msra.mxu0 %v661
    %972 = vmatprep.subr.bf16.mxu0 %v782
    %973 = vmatpush2.bf16.msra.mxu0 %v781
    %974 = vmatprep.subr.bf16.mxu0 %v774
    %975 = vmatpush2.bf16.msra.mxu0 %v773
    %976 = vmatprep.subr.bf16.mxu0 %v766
    %977 = vmatpush2.bf16.msra.mxu0 %v765
    %978 = vmatprep.subr.bf16.mxu0 %v758
    %979 = vmatpush2.bf16.msra.mxu0 %v757
    %980 = vmatprep.subr.bf16.mxu0 %v750
    %981 = vmatpush2.bf16.msra.mxu0 %v749
    %982 = vmatprep.subr.bf16.mxu0 %v742
    %983 = vmatpush2.bf16.msra.mxu0 %v741
    %984 = vmatprep.subr.bf16.mxu0 %v734
    %985 = vmatpush2.bf16.msra.mxu0 %v733
    %986 = vmatprep.subr.bf16.mxu0 %v726
    %987 = vmatpush2.bf16.msra.mxu0 %v725
    %988 = vmatprep.mubr.bf16.mxu0 %v104
    %989 = vmatmul.mubr.bf16.gmra.mxu0 %v103
    %v990 = vpop.f32.mrf.mxu0
    %v991 = vadd.f32 %v246, %v990
    %v992 = vpop.f32.mrf.mxu0
    %v993 = vadd.f32 %v250, %v992
    %v994 = vpop.f32.mrf.mxu0
    %v995 = vpop.f32.mrf.mxu0
    %996 = vdwg.mxu0
    %997 = vmatprep.subr.bf16.mxu0 %v720
    %998 = vmatpush1.bf16.msra.mxu0 %v719
    %999 = vmatprep.subr.bf16.mxu0 %v712
    %1000 = vmatpush1.bf16.msra.mxu0 %v711
    %1001 = vmatprep.subr.bf16.mxu0 %v704
    %1002 = vmatpush1.bf16.msra.mxu0 %v703
    %1003 = vmatprep.subr.bf16.mxu0 %v696
    %1004 = vmatpush1.bf16.msra.mxu0 %v695
    %1005 = vmatprep.subr.bf16.mxu0 %v688
    %1006 = vmatpush1.bf16.msra.mxu0 %v687
    %1007 = vmatprep.subr.bf16.mxu0 %v680
    %1008 = vmatpush1.bf16.msra.mxu0 %v679
    %1009 = vmatprep.subr.bf16.mxu0 %v672
    %1010 = vmatpush1.bf16.msra.mxu0 %v671
    %1011 = vmatprep.subr.bf16.mxu0 %v664
    %1012 = vmatpush1.bf16.msra.mxu0 %v663
    %1013 = vmatprep.subr.bf16.mxu0 %v784
    %1014 = vmatpush2.bf16.msra.mxu0 %v783
    %1015 = vmatprep.subr.bf16.mxu0 %v776
    %1016 = vmatpush2.bf16.msra.mxu0 %v775
    %1017 = vmatprep.subr.bf16.mxu0 %v768
    %1018 = vmatpush2.bf16.msra.mxu0 %v767
    %1019 = vmatprep.subr.bf16.mxu0 %v760
    %1020 = vmatpush2.bf16.msra.mxu0 %v759
    %1021 = vmatprep.subr.bf16.mxu0 %v752
    %1022 = vmatpush2.bf16.msra.mxu0 %v751
    %1023 = vmatprep.subr.bf16.mxu0 %v744
    %1024 = vmatpush2.bf16.msra.mxu0 %v743
    %1025 = vmatprep.subr.bf16.mxu0 %v736
    %1026 = vmatpush2.bf16.msra.mxu0 %v735
    %1027 = vmatprep.subr.bf16.mxu0 %v728
    %1028 = vmatpush2.bf16.msra.mxu0 %v727
    %1029 = vmatprep.mubr.bf16.mxu0 %v104
    %1030 = vmatmul.mubr.bf16.gmra.mxu0 %v103
    %v1031 = vpop.f32.mrf.mxu0
    %v1032 = vadd.f32 %v254, %v1031
    %v1033 = vpop.f32.mrf.mxu0
    %v1034 = vadd.f32 %v258, %v1033
    %v1035 = vpop.f32.mrf.mxu0
    %v1036 = vpop.f32.mrf.mxu0
    %1037 = vdwg.mxu0
    %1038 = vmatprep.subr.bf16.mxu0 %v722
    %1039 = vmatpush1.bf16.msra.mxu0 %v721
    %1040 = vmatprep.subr.bf16.mxu0 %v714
    %1041 = vmatpush1.bf16.msra.mxu0 %v713
    %1042 = vmatprep.subr.bf16.mxu0 %v706
    %1043 = vmatpush1.bf16.msra.mxu0 %v705
    %1044 = vmatprep.subr.bf16.mxu0 %v698
    %1045 = vmatpush1.bf16.msra.mxu0 %v697
    %1046 = vmatprep.subr.bf16.mxu0 %v690
    %1047 = vmatpush1.bf16.msra.mxu0 %v689
    %1048 = vmatprep.subr.bf16.mxu0 %v682
    %1049 = vmatpush1.bf16.msra.mxu0 %v681
    %1050 = vmatprep.subr.bf16.mxu0 %v674
    %1051 = vmatpush1.bf16.msra.mxu0 %v673
    %1052 = vmatprep.subr.bf16.mxu0 %v666
    %1053 = vmatpush1.bf16.msra.mxu0 %v665
    %1054 = vmatprep.subr.bf16.mxu0 %v786
    %1055 = vmatpush2.bf16.msra.mxu0 %v785
    %1056 = vmatprep.subr.bf16.mxu0 %v778
    %1057 = vmatpush2.bf16.msra.mxu0 %v777
    %1058 = vmatprep.subr.bf16.mxu0 %v770
    %1059 = vmatpush2.bf16.msra.mxu0 %v769
    %1060 = vmatprep.subr.bf16.mxu0 %v762
    %1061 = vmatpush2.bf16.msra.mxu0 %v761
    %1062 = vmatprep.subr.bf16.mxu0 %v754
    %1063 = vmatpush2.bf16.msra.mxu0 %v753
    %1064 = vmatprep.subr.bf16.mxu0 %v746
    %1065 = vmatpush2.bf16.msra.mxu0 %v745
    %1066 = vmatprep.subr.bf16.mxu0 %v738
    %1067 = vmatpush2.bf16.msra.mxu0 %v737
    %1068 = vmatprep.subr.bf16.mxu0 %v730
    %1069 = vmatpush2.bf16.msra.mxu0 %v729
    %1070 = vmatprep.mubr.bf16.mxu0 %v104
    %1071 = vmatmul.mubr.bf16.gmra.mxu0 %v103
    %v1072 = vpop.f32.mrf.mxu0
    %v1073 = vadd.f32 %v262, %v1072
    %v1074 = vpop.f32.mrf.mxu0
    %v1075 = vadd.f32 %v266, %v1074
    %v1076 = vpop.f32.mrf.mxu0
    %v1077 = vpop.f32.mrf.mxu0
    %1078 = vdwg.mxu0
    %v1079 = vmul.f32 %v950, 0.2
    %v1080 = vmul.f32 %v952, 0.2
    %v1081 = vmul.f32 %v991, 0.2
    %v1082 = vmul.f32 %v993, 0.2
    %v1083 = vmul.f32 %v1032, 0.2
    %v1084 = vmul.f32 %v1034, 0.2
    %v1085 = vmul.f32 %v1073, 0.2
    %v1086 = vmul.f32 %v1075, 0.2
    %v1087 = vmax.f32 %v950, %v1079
    %v1088 = vmax.f32 %v952, %v1080
    %v1089 = vmax.f32 %v991, %v1081
    %v1090 = vmax.f32 %v993, %v1082
    %v1091 = vmax.f32 %v1032, %v1083
    %v1092 = vmax.f32 %v1034, %v1084
    %v1093 = vmax.f32 %v1073, %v1085
    %v1094 = vmax.f32 %v1075, %v1086
    %v1095 = vpack.c.bf16 %v1087, %v1087
    %v1096 = vpack.c.bf16 %v1088, %v1088
    %v1097 = vpack.c.bf16 %v1089, %v1089
    %v1098 = vpack.c.bf16 %v1090, %v1090
    %v1099 = vpack.c.bf16 %v1091, %v1091
    %v1100 = vpack.c.bf16 %v1092, %v1092
    %v1101 = vpack.c.bf16 %v1093, %v1093
    %v1102 = vpack.c.bf16 %v1094, %v1094
    %v1103 = vld [vmem:[#allocation8] sm:$0xf]
    %v1104 = vld [vmem:[#allocation8 + $0x4] sm:$0xf]
    %v1105 = vld [vmem:[#allocation8 + $0x8] sm:$0xf]
    %v1106 = vld [vmem:[#allocation8 + $0xc] sm:$0xf]
    %v1107 = vld [vmem:[#allocation8 + $0x10] sm:$0xf]
    %v1108 = vld [vmem:[#allocation8 + $0x14] sm:$0xf]
    %v1109 = vld [vmem:[#allocation8 + $0x18] sm:$0xf]
    %v1110 = vld [vmem:[#allocation8 + $0x1c] sm:$0xf]
    %v1111 = vld [vmem:[#allocation8 + $0x20] sm:$0xf]
    %v1112 = vld [vmem:[#allocation8 + $0x24] sm:$0xf]
    %v1113 = vld [vmem:[#allocation8 + $0x28] sm:$0xf]
    %v1114 = vld [vmem:[#allocation8 + $0x2c] sm:$0xf]
    %v1115 = vld [vmem:[#allocation8 + $0x30] sm:$0xf]
    %v1116 = vld [vmem:[#allocation8 + $0x34] sm:$0xf]
    %v1117 = vld [vmem:[#allocation8 + $0x38] sm:$0xf]
    %v1118 = vld [vmem:[#allocation8 + $0x3c] sm:$0xf]
    %v1119 = vld [vmem:[#allocation8 + $0x40] sm:$0xf]
    %v1120 = vld [vmem:[#allocation8 + $0x44] sm:$0xf]
    %v1121 = vld [vmem:[#allocation8 + $0x48] sm:$0xf]
    %v1122 = vld [vmem:[#allocation8 + $0x4c] sm:$0xf]
    %v1123 = vld [vmem:[#allocation8 + $0x50] sm:$0xf]
    %v1124 = vld [vmem:[#allocation8 + $0x54] sm:$0xf]
    %v1125 = vld [vmem:[#allocation8 + $0x58] sm:$0xf]
    %v1126 = vld [vmem:[#allocation8 + $0x5c] sm:$0xf]
    %v1127 = vld [vmem:[#allocation8 + $0x60] sm:$0xf]
    %v1128 = vld [vmem:[#allocation8 + $0x64] sm:$0xf]
    %v1129 = vld [vmem:[#allocation8 + $0x68] sm:$0xf]
    %v1130 = vld [vmem:[#allocation8 + $0x6c] sm:$0xf]
    %v1131 = vld [vmem:[#allocation8 + $0x70] sm:$0xf]
    %v1132 = vld [vmem:[#allocation8 + $0x74] sm:$0xf]
    %v1133 = vld [vmem:[#allocation8 + $0x78] sm:$0xf]
    %v1134 = vld [vmem:[#allocation8 + $0x7c] sm:$0xf]
    %v1135 = vld [vmem:[#allocation8 + $0x80] sm:$0xf]
    %v1136 = vld [vmem:[#allocation8 + $0x84] sm:$0xf]
    %v1137 = vld [vmem:[#allocation8 + $0x88] sm:$0xf]
    %v1138 = vld [vmem:[#allocation8 + $0x8c] sm:$0xf]
    %v1139 = vld [vmem:[#allocation8 + $0x90] sm:$0xf]
    %v1140 = vld [vmem:[#allocation8 + $0x94] sm:$0xf]
    %v1141 = vld [vmem:[#allocation8 + $0x98] sm:$0xf]
    %v1142 = vld [vmem:[#allocation8 + $0x9c] sm:$0xf]
    %v1143 = vld [vmem:[#allocation8 + $0xa0] sm:$0xf]
    %v1144 = vld [vmem:[#allocation8 + $0xa4] sm:$0xf]
    %v1145 = vld [vmem:[#allocation8 + $0xa8] sm:$0xf]
    %v1146 = vld [vmem:[#allocation8 + $0xac] sm:$0xf]
    %v1147 = vld [vmem:[#allocation8 + $0xb0] sm:$0xf]
    %v1148 = vld [vmem:[#allocation8 + $0xb4] sm:$0xf]
    %v1149 = vld [vmem:[#allocation8 + $0xb8] sm:$0xf]
    %v1150 = vld [vmem:[#allocation8 + $0xbc] sm:$0xf]
    %v1151 = vld [vmem:[#allocation8 + $0xc0] sm:$0xf]
    %v1152 = vld [vmem:[#allocation8 + $0xc4] sm:$0xf]
    %v1153 = vld [vmem:[#allocation8 + $0xc8] sm:$0xf]
    %v1154 = vld [vmem:[#allocation8 + $0xcc] sm:$0xf]
    %v1155 = vld [vmem:[#allocation8 + $0xd0] sm:$0xf]
    %v1156 = vld [vmem:[#allocation8 + $0xd4] sm:$0xf]
    %v1157 = vld [vmem:[#allocation8 + $0xd8] sm:$0xf]
    %v1158 = vld [vmem:[#allocation8 + $0xdc] sm:$0xf]
    %v1159 = vld [vmem:[#allocation8 + $0xe0] sm:$0xf]
    %v1160 = vld [vmem:[#allocation8 + $0xe4] sm:$0xf]
    %v1161 = vld [vmem:[#allocation8 + $0xe8] sm:$0xf]
    %v1162 = vld [vmem:[#allocation8 + $0xec] sm:$0xf]
    %v1163 = vld [vmem:[#allocation8 + $0xf0] sm:$0xf]
    %v1164 = vld [vmem:[#allocation8 + $0xf4] sm:$0xf]
    %v1165 = vld [vmem:[#allocation8 + $0xf8] sm:$0xf]
    %v1166 = vld [vmem:[#allocation8 + $0xfc] sm:$0xf]
    %v1167 = vld [vmem:[#allocation8 + $0x100] sm:$0xf]
    %v1168 = vld [vmem:[#allocation8 + $0x104] sm:$0xf]
    %v1169 = vld [vmem:[#allocation8 + $0x108] sm:$0xf]
    %v1170 = vld [vmem:[#allocation8 + $0x10c] sm:$0xf]
    %v1171 = vld [vmem:[#allocation8 + $0x110] sm:$0xf]
    %v1172 = vld [vmem:[#allocation8 + $0x114] sm:$0xf]
    %v1173 = vld [vmem:[#allocation8 + $0x118] sm:$0xf]
    %v1174 = vld [vmem:[#allocation8 + $0x11c] sm:$0xf]
    %v1175 = vld [vmem:[#allocation8 + $0x120] sm:$0xf]
    %v1176 = vld [vmem:[#allocation8 + $0x124] sm:$0xf]
    %v1177 = vld [vmem:[#allocation8 + $0x128] sm:$0xf]
    %v1178 = vld [vmem:[#allocation8 + $0x12c] sm:$0xf]
    %v1179 = vld [vmem:[#allocation8 + $0x130] sm:$0xf]
    %v1180 = vld [vmem:[#allocation8 + $0x134] sm:$0xf]
    %v1181 = vld [vmem:[#allocation8 + $0x138] sm:$0xf]
    %v1182 = vld [vmem:[#allocation8 + $0x13c] sm:$0xf]
    %v1183 = vld [vmem:[#allocation8 + $0x140] sm:$0xf]
    %v1184 = vld [vmem:[#allocation8 + $0x144] sm:$0xf]
    %v1185 = vld [vmem:[#allocation8 + $0x148] sm:$0xf]
    %v1186 = vld [vmem:[#allocation8 + $0x14c] sm:$0xf]
    %v1187 = vld [vmem:[#allocation8 + $0x150] sm:$0xf]
    %v1188 = vld [vmem:[#allocation8 + $0x154] sm:$0xf]
    %v1189 = vld [vmem:[#allocation8 + $0x158] sm:$0xf]
    %v1190 = vld [vmem:[#allocation8 + $0x15c] sm:$0xf]
    %v1191 = vld [vmem:[#allocation8 + $0x160] sm:$0xf]
    %v1192 = vld [vmem:[#allocation8 + $0x164] sm:$0xf]
    %v1193 = vld [vmem:[#allocation8 + $0x168] sm:$0xf]
    %v1194 = vld [vmem:[#allocation8 + $0x16c] sm:$0xf]
    %v1195 = vld [vmem:[#allocation8 + $0x170] sm:$0xf]
    %v1196 = vld [vmem:[#allocation8 + $0x174] sm:$0xf]
    %v1197 = vld [vmem:[#allocation8 + $0x178] sm:$0xf]
    %v1198 = vld [vmem:[#allocation8 + $0x17c] sm:$0xf]
    %v1199 = vld [vmem:[#allocation8 + $0x180] sm:$0xf]
    %v1200 = vld [vmem:[#allocation8 + $0x184] sm:$0xf]
    %v1201 = vld [vmem:[#allocation8 + $0x188] sm:$0xf]
    %v1202 = vld [vmem:[#allocation8 + $0x18c] sm:$0xf]
    %v1203 = vld [vmem:[#allocation8 + $0x190] sm:$0xf]
    %v1204 = vld [vmem:[#allocation8 + $0x194] sm:$0xf]
    %v1205 = vld [vmem:[#allocation8 + $0x198] sm:$0xf]
    %v1206 = vld [vmem:[#allocation8 + $0x19c] sm:$0xf]
    %v1207 = vld [vmem:[#allocation8 + $0x1a0] sm:$0xf]
    %v1208 = vld [vmem:[#allocation8 + $0x1a4] sm:$0xf]
    %v1209 = vld [vmem:[#allocation8 + $0x1a8] sm:$0xf]
    %v1210 = vld [vmem:[#allocation8 + $0x1ac] sm:$0xf]
    %v1211 = vld [vmem:[#allocation8 + $0x1b0] sm:$0xf]
    %v1212 = vld [vmem:[#allocation8 + $0x1b4] sm:$0xf]
    %v1213 = vld [vmem:[#allocation8 + $0x1b8] sm:$0xf]
    %v1214 = vld [vmem:[#allocation8 + $0x1bc] sm:$0xf]
    %v1215 = vld [vmem:[#allocation8 + $0x1c0] sm:$0xf]
    %v1216 = vld [vmem:[#allocation8 + $0x1c4] sm:$0xf]
    %v1217 = vld [vmem:[#allocation8 + $0x1c8] sm:$0xf]
    %v1218 = vld [vmem:[#allocation8 + $0x1cc] sm:$0xf]
    %v1219 = vld [vmem:[#allocation8 + $0x1d0] sm:$0xf]
    %v1220 = vld [vmem:[#allocation8 + $0x1d4] sm:$0xf]
    %v1221 = vld [vmem:[#allocation8 + $0x1d8] sm:$0xf]
    %v1222 = vld [vmem:[#allocation8 + $0x1dc] sm:$0xf]
    %v1223 = vld [vmem:[#allocation8 + $0x1e0] sm:$0xf]
    %v1224 = vld [vmem:[#allocation8 + $0x1e4] sm:$0xf]
    %v1225 = vld [vmem:[#allocation8 + $0x1e8] sm:$0xf]
    %v1226 = vld [vmem:[#allocation8 + $0x1ec] sm:$0xf]
    %v1227 = vld [vmem:[#allocation8 + $0x1f0] sm:$0xf]
    %v1228 = vld [vmem:[#allocation8 + $0x1f4] sm:$0xf]
    %v1229 = vld [vmem:[#allocation8 + $0x1f8] sm:$0xf]
    %v1230 = vld [vmem:[#allocation8 + $0x1fc] sm:$0xf]
    %v1231 = vld [vmem:[%s4] sm:$0x1]
    %v1233 = vlaneseq
    %v1234 = vshrl.u32 %v1233, 7
    %v1235 = vsub.s32 0, %v1234
    %v1236 = vrot.slane %v1231, %v1235
    %v1366 = vunpack.c.l.b16 %v1103
    %v1367 = vunpack.c.l.b16 %v1104
    %v1368 = vunpack.c.l.b16 %v1105
    %v1369 = vunpack.c.l.b16 %v1106
    %v1370 = vunpack.c.l.b16 %v1107
    %v1371 = vunpack.c.l.b16 %v1108
    %v1372 = vunpack.c.l.b16 %v1109
    %v1373 = vunpack.c.l.b16 %v1110
    %v1374 = vunpack.c.l.b16 %v1111
    %v1375 = vunpack.c.l.b16 %v1112
    %v1376 = vunpack.c.l.b16 %v1113
    %v1377 = vunpack.c.l.b16 %v1114
    %v1378 = vunpack.c.l.b16 %v1115
    %v1379 = vunpack.c.l.b16 %v1116
    %v1380 = vunpack.c.l.b16 %v1117
    %v1381 = vunpack.c.l.b16 %v1118
    %v1382 = vunpack.c.l.b16 %v1119
    %v1383 = vunpack.c.l.b16 %v1120
    %v1384 = vunpack.c.l.b16 %v1121
    %v1385 = vunpack.c.l.b16 %v1122
    %v1386 = vunpack.c.l.b16 %v1123
    %v1387 = vunpack.c.l.b16 %v1124
    %v1388 = vunpack.c.l.b16 %v1125
    %v1389 = vunpack.c.l.b16 %v1126
    %v1390 = vunpack.c.l.b16 %v1127
    %v1391 = vunpack.c.l.b16 %v1128
    %v1392 = vunpack.c.l.b16 %v1129
    %v1393 = vunpack.c.l.b16 %v1130
    %v1394 = vunpack.c.l.b16 %v1131
    %v1395 = vunpack.c.l.b16 %v1132
    %v1396 = vunpack.c.l.b16 %v1133
    %v1397 = vunpack.c.l.b16 %v1134
    %v1398 = vunpack.c.l.b16 %v1135
    %v1399 = vunpack.c.l.b16 %v1136
    %v1400 = vunpack.c.l.b16 %v1137
    %v1401 = vunpack.c.l.b16 %v1138
    %v1402 = vunpack.c.l.b16 %v1139
    %v1403 = vunpack.c.l.b16 %v1140
    %v1404 = vunpack.c.l.b16 %v1141
    %v1405 = vunpack.c.l.b16 %v1142
    %v1406 = vunpack.c.l.b16 %v1143
    %v1407 = vunpack.c.l.b16 %v1144
    %v1408 = vunpack.c.l.b16 %v1145
    %v1409 = vunpack.c.l.b16 %v1146
    %v1410 = vunpack.c.l.b16 %v1147
    %v1411 = vunpack.c.l.b16 %v1148
    %v1412 = vunpack.c.l.b16 %v1149
    %v1413 = vunpack.c.l.b16 %v1150
    %v1414 = vunpack.c.l.b16 %v1151
    %v1415 = vunpack.c.l.b16 %v1152
    %v1416 = vunpack.c.l.b16 %v1153
    %v1417 = vunpack.c.l.b16 %v1154
    %v1418 = vunpack.c.l.b16 %v1155
    %v1419 = vunpack.c.l.b16 %v1156
    %v1420 = vunpack.c.l.b16 %v1157
    %v1421 = vunpack.c.l.b16 %v1158
    %v1422 = vunpack.c.l.b16 %v1159
    %v1423 = vunpack.c.l.b16 %v1160
    %v1424 = vunpack.c.l.b16 %v1161
    %v1425 = vunpack.c.l.b16 %v1162
    %v1426 = vunpack.c.l.b16 %v1163
    %v1427 = vunpack.c.l.b16 %v1164
    %v1428 = vunpack.c.l.b16 %v1165
    %v1429 = vunpack.c.l.b16 %v1166
    %v1430 = vunpack.c.l.b16 %v1167
    %v1431 = vunpack.c.l.b16 %v1168
    %v1432 = vunpack.c.l.b16 %v1169
    %v1433 = vunpack.c.l.b16 %v1170
    %v1434 = vunpack.c.l.b16 %v1171
    %v1435 = vunpack.c.l.b16 %v1172
    %v1436 = vunpack.c.l.b16 %v1173
    %v1437 = vunpack.c.l.b16 %v1174
    %v1438 = vunpack.c.l.b16 %v1175
    %v1439 = vunpack.c.l.b16 %v1176
    %v1440 = vunpack.c.l.b16 %v1177
    %v1441 = vunpack.c.l.b16 %v1178
    %v1442 = vunpack.c.l.b16 %v1179
    %v1443 = vunpack.c.l.b16 %v1180
    %v1444 = vunpack.c.l.b16 %v1181
    %v1445 = vunpack.c.l.b16 %v1182
    %v1446 = vunpack.c.l.b16 %v1183
    %v1447 = vunpack.c.l.b16 %v1184
    %v1448 = vunpack.c.l.b16 %v1185
    %v1449 = vunpack.c.l.b16 %v1186
    %v1450 = vunpack.c.l.b16 %v1187
    %v1451 = vunpack.c.l.b16 %v1188
    %v1452 = vunpack.c.l.b16 %v1189
    %v1453 = vunpack.c.l.b16 %v1190
    %v1454 = vunpack.c.l.b16 %v1191
    %v1455 = vunpack.c.l.b16 %v1192
    %v1456 = vunpack.c.l.b16 %v1193
    %v1457 = vunpack.c.l.b16 %v1194
    %v1458 = vunpack.c.l.b16 %v1195
    %v1459 = vunpack.c.l.b16 %v1196
    %v1460 = vunpack.c.l.b16 %v1197
    %v1461 = vunpack.c.l.b16 %v1198
    %v1462 = vunpack.c.l.b16 %v1199
    %v1463 = vunpack.c.l.b16 %v1200
    %v1464 = vunpack.c.l.b16 %v1201
    %v1465 = vunpack.c.l.b16 %v1202
    %v1466 = vunpack.c.l.b16 %v1203
    %v1467 = vunpack.c.l.b16 %v1204
    %v1468 = vunpack.c.l.b16 %v1205
    %v1469 = vunpack.c.l.b16 %v1206
    %v1470 = vunpack.c.l.b16 %v1207
    %v1471 = vunpack.c.l.b16 %v1208
    %v1472 = vunpack.c.l.b16 %v1209
    %v1473 = vunpack.c.l.b16 %v1210
    %v1474 = vunpack.c.l.b16 %v1211
    %v1475 = vunpack.c.l.b16 %v1212
    %v1476 = vunpack.c.l.b16 %v1213
    %v1477 = vunpack.c.l.b16 %v1214
    %v1478 = vunpack.c.l.b16 %v1215
    %v1479 = vunpack.c.l.b16 %v1216
    %v1480 = vunpack.c.l.b16 %v1217
    %v1481 = vunpack.c.l.b16 %v1218
    %v1482 = vunpack.c.l.b16 %v1219
    %v1483 = vunpack.c.l.b16 %v1220
    %v1484 = vunpack.c.l.b16 %v1221
    %v1485 = vunpack.c.l.b16 %v1222
    %v1486 = vunpack.c.l.b16 %v1223
    %v1487 = vunpack.c.l.b16 %v1224
    %v1488 = vunpack.c.l.b16 %v1225
    %v1489 = vunpack.c.l.b16 %v1226
    %v1490 = vunpack.c.l.b16 %v1227
    %v1491 = vunpack.c.l.b16 %v1228
    %v1492 = vunpack.c.l.b16 %v1229
    %v1493 = vunpack.c.l.b16 %v1230
    %v1494 = vpack.c.b16 %v1367, %v1366
    %v1495 = vpack.c.b16 %v1369, %v1368
    %v1496 = vpack.c.b16 %v1371, %v1370
    %v1497 = vpack.c.b16 %v1373, %v1372
    %v1498 = vpack.c.b16 %v1375, %v1374
    %v1499 = vpack.c.b16 %v1377, %v1376
    %v1500 = vpack.c.b16 %v1379, %v1378
    %v1501 = vpack.c.b16 %v1381, %v1380
    %v1502 = vpack.c.b16 %v1383, %v1382
    %v1503 = vpack.c.b16 %v1385, %v1384
    %v1504 = vpack.c.b16 %v1387, %v1386
    %v1505 = vpack.c.b16 %v1389, %v1388
    %v1506 = vpack.c.b16 %v1391, %v1390
    %v1507 = vpack.c.b16 %v1393, %v1392
    %v1508 = vpack.c.b16 %v1395, %v1394
    %v1509 = vpack.c.b16 %v1397, %v1396
    %v1510 = vpack.c.b16 %v1399, %v1398
    %v1511 = vpack.c.b16 %v1401, %v1400
    %v1512 = vpack.c.b16 %v1403, %v1402
    %v1513 = vpack.c.b16 %v1405, %v1404
    %v1514 = vpack.c.b16 %v1407, %v1406
    %v1515 = vpack.c.b16 %v1409, %v1408
    %v1516 = vpack.c.b16 %v1411, %v1410
    %v1517 = vpack.c.b16 %v1413, %v1412
    %v1518 = vpack.c.b16 %v1415, %v1414
    %v1519 = vpack.c.b16 %v1417, %v1416
    %v1520 = vpack.c.b16 %v1419, %v1418
    %v1521 = vpack.c.b16 %v1421, %v1420
    %v1522 = vpack.c.b16 %v1423, %v1422
    %v1523 = vpack.c.b16 %v1425, %v1424
    %v1524 = vpack.c.b16 %v1427, %v1426
    %v1525 = vpack.c.b16 %v1429, %v1428
    %v1526 = vpack.c.b16 %v1431, %v1430
    %v1527 = vpack.c.b16 %v1433, %v1432
    %v1528 = vpack.c.b16 %v1435, %v1434
    %v1529 = vpack.c.b16 %v1437, %v1436
    %v1530 = vpack.c.b16 %v1439, %v1438
    %v1531 = vpack.c.b16 %v1441, %v1440
    %v1532 = vpack.c.b16 %v1443, %v1442
    %v1533 = vpack.c.b16 %v1445, %v1444
    %v1534 = vpack.c.b16 %v1447, %v1446
    %v1535 = vpack.c.b16 %v1449, %v1448
    %v1536 = vpack.c.b16 %v1451, %v1450
    %v1537 = vpack.c.b16 %v1453, %v1452
    %v1538 = vpack.c.b16 %v1455, %v1454
    %v1539 = vpack.c.b16 %v1457, %v1456
    %v1540 = vpack.c.b16 %v1459, %v1458
    %v1541 = vpack.c.b16 %v1461, %v1460
    %v1542 = vpack.c.b16 %v1463, %v1462
    %v1543 = vpack.c.b16 %v1465, %v1464
    %v1544 = vpack.c.b16 %v1467, %v1466
    %v1545 = vpack.c.b16 %v1469, %v1468
    %v1546 = vpack.c.b16 %v1471, %v1470
    %v1547 = vpack.c.b16 %v1473, %v1472
    %v1548 = vpack.c.b16 %v1475, %v1474
    %v1549 = vpack.c.b16 %v1477, %v1476
    %v1550 = vpack.c.b16 %v1479, %v1478
    %v1551 = vpack.c.b16 %v1481, %v1480
    %v1552 = vpack.c.b16 %v1483, %v1482
    %v1553 = vpack.c.b16 %v1485, %v1484
    %v1554 = vpack.c.b16 %v1487, %v1486
    %v1555 = vpack.c.b16 %v1489, %v1488
    %v1556 = vpack.c.b16 %v1491, %v1490
    %v1557 = vpack.c.b16 %v1493, %v1492
    %1622 = vmatprep.subr.bf16.mxu0 0
    %1623 = vmatpush1.bf16.msra.mxu0 %v1501
    %1624 = vmatprep.subr.bf16.mxu0 0
    %1625 = vmatpush1.bf16.msra.mxu0 %v1500
    %1626 = vmatprep.subr.bf16.mxu0 0
    %1627 = vmatpush1.bf16.msra.mxu0 %v1499
    %1628 = vmatprep.subr.bf16.mxu0 0
    %1629 = vmatpush1.bf16.msra.mxu0 %v1498
    %1630 = vmatprep.subr.bf16.mxu0 0
    %1631 = vmatpush1.bf16.msra.mxu0 %v1497
    %1632 = vmatprep.subr.bf16.mxu0 0
    %1633 = vmatpush1.bf16.msra.mxu0 %v1496
    %1634 = vmatprep.subr.bf16.mxu0 0
    %1635 = vmatpush1.bf16.msra.mxu0 %v1495
    %1636 = vmatprep.subr.bf16.mxu0 0
    %1637 = vmatpush1.bf16.msra.mxu0 %v1494
    %1638 = vmatprep.subr.bf16.mxu0 0
    %1639 = vmatpush2.bf16.msra.mxu0 %v1509
    %1640 = vmatprep.subr.bf16.mxu0 0
    %1641 = vmatpush2.bf16.msra.mxu0 %v1508
    %1642 = vmatprep.subr.bf16.mxu0 0
    %1643 = vmatpush2.bf16.msra.mxu0 %v1507
    %1644 = vmatprep.subr.bf16.mxu0 0
    %1645 = vmatpush2.bf16.msra.mxu0 %v1506
    %1646 = vmatprep.subr.bf16.mxu0 0
    %1647 = vmatpush2.bf16.msra.mxu0 %v1505
    %1648 = vmatprep.subr.bf16.mxu0 0
    %1649 = vmatpush2.bf16.msra.mxu0 %v1504
    %1650 = vmatprep.subr.bf16.mxu0 0
    %1651 = vmatpush2.bf16.msra.mxu0 %v1503
    %1652 = vmatprep.subr.bf16.mxu0 0
    %1653 = vmatpush2.bf16.msra.mxu0 %v1502
    %1654 = vmatprep.mubr.bf16.mxu0 %v1096
    %1655 = vmatmul.mubr.bf16.gmra.mxu0 %v1095
    %v1656 = vpop.f32.mrf.mxu0
    %v1657 = vadd.f32 %v1236, %v1656
    %v1658 = vpop.f32.mrf.mxu0
    %v1659 = vpop.f32.mrf.mxu0
    %v1660 = vpop.f32.mrf.mxu0
    %1661 = vdwg.mxu0
    %1662 = vmatprep.subr.bf16.mxu0 0
    %1663 = vmatpush1.bf16.msra.mxu0 %v1517
    %1664 = vmatprep.subr.bf16.mxu0 0
    %1665 = vmatpush1.bf16.msra.mxu0 %v1516
    %1666 = vmatprep.subr.bf16.mxu0 0
    %1667 = vmatpush1.bf16.msra.mxu0 %v1515
    %1668 = vmatprep.subr.bf16.mxu0 0
    %1669 = vmatpush1.bf16.msra.mxu0 %v1514
    %1670 = vmatprep.subr.bf16.mxu0 0
    %1671 = vmatpush1.bf16.msra.mxu0 %v1513
    %1672 = vmatprep.subr.bf16.mxu0 0
    %1673 = vmatpush1.bf16.msra.mxu0 %v1512
    %1674 = vmatprep.subr.bf16.mxu0 0
    %1675 = vmatpush1.bf16.msra.mxu0 %v1511
    %1676 = vmatprep.subr.bf16.mxu0 0
    %1677 = vmatpush1.bf16.msra.mxu0 %v1510
    %1678 = vmatprep.subr.bf16.mxu0 0
    %1679 = vmatpush2.bf16.msra.mxu0 %v1525
    %1680 = vmatprep.subr.bf16.mxu0 0
    %1681 = vmatpush2.bf16.msra.mxu0 %v1524
    %1682 = vmatprep.subr.bf16.mxu0 0
    %1683 = vmatpush2.bf16.msra.mxu0 %v1523
    %1684 = vmatprep.subr.bf16.mxu0 0
    %1685 = vmatpush2.bf16.msra.mxu0 %v1522
    %1686 = vmatprep.subr.bf16.mxu0 0
    %1687 = vmatpush2.bf16.msra.mxu0 %v1521
    %1688 = vmatprep.subr.bf16.mxu0 0
    %1689 = vmatpush2.bf16.msra.mxu0 %v1520
    %1690 = vmatprep.subr.bf16.mxu0 0
    %1691 = vmatpush2.bf16.msra.mxu0 %v1519
    %1692 = vmatprep.subr.bf16.mxu0 0
    %1693 = vmatpush2.bf16.msra.mxu0 %v1518
    %1694 = vmatprep.mubr.bf16.mxu0 %v1098
    %1695 = vmatmul.mubr.bf16.gmra.mxu0 %v1097
    %v1696 = vpop.f32.mrf.mxu0
    %v1697 = vadd.f32 %v1657, %v1696
    %v1698 = vpop.f32.mrf.mxu0
    %v1699 = vpop.f32.mrf.mxu0
    %v1700 = vpop.f32.mrf.mxu0
    %1701 = vdwg.mxu0
    %1702 = vmatprep.subr.bf16.mxu0 0
    %1703 = vmatpush1.bf16.msra.mxu0 %v1533
    %1704 = vmatprep.subr.bf16.mxu0 0
    %1705 = vmatpush1.bf16.msra.mxu0 %v1532
    %1706 = vmatprep.subr.bf16.mxu0 0
    %1707 = vmatpush1.bf16.msra.mxu0 %v1531
    %1708 = vmatprep.subr.bf16.mxu0 0
    %1709 = vmatpush1.bf16.msra.mxu0 %v1530
    %1710 = vmatprep.subr.bf16.mxu0 0
    %1711 = vmatpush1.bf16.msra.mxu0 %v1529
    %1712 = vmatprep.subr.bf16.mxu0 0
    %1713 = vmatpush1.bf16.msra.mxu0 %v1528
    %1714 = vmatprep.subr.bf16.mxu0 0
    %1715 = vmatpush1.bf16.msra.mxu0 %v1527
    %1716 = vmatprep.subr.bf16.mxu0 0
    %1717 = vmatpush1.bf16.msra.mxu0 %v1526
    %1718 = vmatprep.subr.bf16.mxu0 0
    %1719 = vmatpush2.bf16.msra.mxu0 %v1541
    %1720 = vmatprep.subr.bf16.mxu0 0
    %1721 = vmatpush2.bf16.msra.mxu0 %v1540
    %1722 = vmatprep.subr.bf16.mxu0 0
    %1723 = vmatpush2.bf16.msra.mxu0 %v1539
    %1724 = vmatprep.subr.bf16.mxu0 0
    %1725 = vmatpush2.bf16.msra.mxu0 %v1538
    %1726 = vmatprep.subr.bf16.mxu0 0
    %1727 = vmatpush2.bf16.msra.mxu0 %v1537
    %1728 = vmatprep.subr.bf16.mxu0 0
    %1729 = vmatpush2.bf16.msra.mxu0 %v1536
    %1730 = vmatprep.subr.bf16.mxu0 0
    %1731 = vmatpush2.bf16.msra.mxu0 %v1535
    %1732 = vmatprep.subr.bf16.mxu0 0
    %1733 = vmatpush2.bf16.msra.mxu0 %v1534
    %1734 = vmatprep.mubr.bf16.mxu0 %v1100
    %1735 = vmatmul.mubr.bf16.gmra.mxu0 %v1099
    %v1736 = vpop.f32.mrf.mxu0
    %v1737 = vadd.f32 %v1697, %v1736
    %v1738 = vpop.f32.mrf.mxu0
    %v1739 = vpop.f32.mrf.mxu0
    %v1740 = vpop.f32.mrf.mxu0
    %1741 = vdwg.mxu0
    %1742 = vmatprep.subr.bf16.mxu0 0
    %1743 = vmatpush1.bf16.msra.mxu0 %v1549
    %1744 = vmatprep.subr.bf16.mxu0 0
    %1745 = vmatpush1.bf16.msra.mxu0 %v1548
    %1746 = vmatprep.subr.bf16.mxu0 0
    %1747 = vmatpush1.bf16.msra.mxu0 %v1547
    %1748 = vmatprep.subr.bf16.mxu0 0
    %1749 = vmatpush1.bf16.msra.mxu0 %v1546
    %1750 = vmatprep.subr.bf16.mxu0 0
    %1751 = vmatpush1.bf16.msra.mxu0 %v1545
    %1752 = vmatprep.subr.bf16.mxu0 0
    %1753 = vmatpush1.bf16.msra.mxu0 %v1544
    %1754 = vmatprep.subr.bf16.mxu0 0
    %1755 = vmatpush1.bf16.msra.mxu0 %v1543
    %1756 = vmatprep.subr.bf16.mxu0 0
    %1757 = vmatpush1.bf16.msra.mxu0 %v1542
    %1758 = vmatprep.subr.bf16.mxu0 0
    %1759 = vmatpush2.bf16.msra.mxu0 %v1557
    %1760 = vmatprep.subr.bf16.mxu0 0
    %1761 = vmatpush2.bf16.msra.mxu0 %v1556
    %1762 = vmatprep.subr.bf16.mxu0 0
    %1763 = vmatpush2.bf16.msra.mxu0 %v1555
    %1764 = vmatprep.subr.bf16.mxu0 0
    %1765 = vmatpush2.bf16.msra.mxu0 %v1554
    %1766 = vmatprep.subr.bf16.mxu0 0
    %1767 = vmatpush2.bf16.msra.mxu0 %v1553
    %1768 = vmatprep.subr.bf16.mxu0 0
    %1769 = vmatpush2.bf16.msra.mxu0 %v1552
    %1770 = vmatprep.subr.bf16.mxu0 0
    %1771 = vmatpush2.bf16.msra.mxu0 %v1551
    %1772 = vmatprep.subr.bf16.mxu0 0
    %1773 = vmatpush2.bf16.msra.mxu0 %v1550
    %1774 = vmatprep.mubr.bf16.mxu0 %v1102
    %1775 = vmatmul.mubr.bf16.gmra.mxu0 %v1101
    %v1776 = vpop.f32.mrf.mxu0
    %v1777 = vadd.f32 %v1737, %v1776
    %v1778 = vpop.f32.mrf.mxu0
    %v1779 = vpop.f32.mrf.mxu0
    %v1780 = vpop.f32.mrf.mxu0
    %1781 = vdwg.mxu0
    %1782 = vst [vmem:[#allocation10] sm:$0xff] %v1777
    // Predicated region
    $region38: #{tpu_custom_call.1} parent=1 // pred_check
      _
    $region39: #{tpu_custom_call.1} parent=1 // pred_check_branch
      %1784 = sbr.rel (0) target = $region41
    $region40: #{tpu_custom_call.1} parent=1 // pred_region
      %s1786 = ssub.s32 128, 32
      %1787 = vsyncadd [#allocation4], %s1786
      %s1788 = sshll.u32 [#allocation10], 4
      %s1789 = int_to_ptr.vmem [resolvable:$true] %s1788
      %1794 = dma.vmem_to_hbm [thread:$0]  %s1789, 32, %s5, [#allocation4], 32, 32, 2
    $region41: #{tpu_custom_call.1} parent=1 // pred_fallthru
      _
    // Predicated region
    $region42: #{tpu_custom_call.1} parent=1 // pred_check
      _
    $region43: #{tpu_custom_call.1} parent=1 // pred_check_branch
      %1796 = sbr.rel (0) target = $region45
    $region44: #{tpu_custom_call.1} parent=1 // pred_region
      %1797 = dma.done [#allocation4], 128
    $region45: #{tpu_custom_call.1} parent=1 // pred_fallthru
      _
    %1798 = vsyncpa [#allocation3], 1
    %1799 = vsyncpa [#allocation6], 1
    %1800 = vsyncpa [#allocation9], 1
    %1801 = vsyncpa [#allocation4], 1

</llo_original>
